<compile_context>
chip_gen: v7x
topology: tpu7x:2x2x1
jax: 0.10.0
libtpu: 0.0.40
codegen_flags: <defaults>
</compile_context>

<pallas_src>
import jax
import jax.numpy as jnp
from jax.experimental import pallas as pl
from jax.experimental.pallas import tpu as pltpu

# ----- Module dimensions (from M.__init__) -----
C_IN = 2048
C_OUT = 384
EPS = 1e-3


def _conv_bn_kernel(x_ref, w_ref, g_ref, b_ref, o_ref):
    # 1x1 conv == MXU matmul: [M, Cin](bf16) @ [Cin, tile_cout](bf16) -> f32.
    acc = jnp.dot(x_ref[...], w_ref[...], preferred_element_type=jnp.float32)

    # BatchNorm2d (training mode): per-output-channel batch mean and *biased*
    # variance over the N*H*W axis (axis=0 here).  Two-pass (centered) form
    # avoids catastrophic cancellation; everything stays in f32.
    m = acc.shape[0]
    inv_m = 1.0 / float(m)
    mean = jnp.sum(acc, axis=0, keepdims=True) * inv_m            # [1, tile]
    centered = acc - mean
    var = jnp.sum(centered * centered, axis=0, keepdims=True) * inv_m
    inv_std = jax.lax.rsqrt(var + EPS)

    o_ref[...] = (centered * (inv_std * g_ref[...]) + b_ref[...]).astype(o_ref.dtype)


def conv1x1_batchnorm(x_nchw, w_conv, gamma, beta, *, tile_cout=128):
    """x_nchw: [N, Cin, H, W] f32; w_conv: [Cout, Cin, 1, 1]; gamma/beta: [Cout]."""
    N, Cin, H, W = x_nchw.shape
    Cout = w_conv.shape[0]
    M = N * H * W
    assert Cout % tile_cout == 0
    assert tile_cout % 128 == 0 or tile_cout == Cout  # lane-dim (8,128) rule

    # NCHW -> [M, Cin] (NHWC flatten); tiny (~100 KB bf16) wrapper transpose.
    # bf16 operands -> native bf16 MXU matmul, half the x HBM traffic.
    x_mat = jnp.transpose(x_nchw, (0, 2, 3, 1)).reshape(M, Cin).astype(jnp.bfloat16)

    # [Cout, Cin, 1, 1] -> [Cin, Cout] bf16 (the dominant ~1.5 MiB HBM DMA).
    w_mat = jnp.transpose(w_conv.reshape(Cout, Cin), (1, 0)).astype(jnp.bfloat16)

    gamma2 = gamma.reshape(1, Cout).astype(jnp.float32)
    beta2 = beta.reshape(1, Cout).astype(jnp.float32)

    out_mat = pl.pallas_call(
        _conv_bn_kernel,
        out_shape=jax.ShapeDtypeStruct((M, Cout), jnp.float32),
        grid=(Cout // tile_cout,),
        in_specs=[
            # x stays resident across Cout tiles (constant block index).
            pl.BlockSpec((M, Cin), lambda j: (0, 0)),
            # Weight tiled over Cout (lanes) -> double-buffered 512 KB DMAs.
            pl.BlockSpec((Cin, tile_cout), lambda j: (0, j)),
            pl.BlockSpec((1, tile_cout), lambda j: (0, j)),
            pl.BlockSpec((1, tile_cout), lambda j: (0, j)),
        ],
        out_specs=pl.BlockSpec((M, tile_cout), lambda j: (0, j)),
        compiler_params=pltpu.CompilerParams(
            dimension_semantics=("parallel",),
        ),
    )(x_mat, w_mat, gamma2, beta2)

    # [M, Cout] -> [N, Cout, H, W]; tiny (~38 KB) wrapper transpose.
    out = out_mat.reshape(N, H, W, Cout)
    return jnp.transpose(out, (0, 3, 1, 2))


def _reference(x_nchw, w_conv, gamma, beta, operand_dtype=jnp.float32):
    # Pure-JAX reference: 1x1 conv + training-mode BatchNorm (batch stats).
    # If operand_dtype is bf16, round x and w the same way the kernel does,
    # then compute everything in f32 (f32 accumulation, like the MXU).
    N, Cin, H, W = x_nchw.shape
    Cout = w_conv.shape[0]
    w = w_conv.reshape(Cout, Cin).astype(operand_dtype).astype(jnp.float32)
    x_mat = jnp.transpose(x_nchw, (0, 2, 3, 1)).reshape(-1, Cin)
    x_mat = x_mat.astype(operand_dtype).astype(jnp.float32)
    y = jnp.dot(x_mat, w.T, precision=jax.lax.Precision.HIGHEST)
    mean = jnp.mean(y, axis=0, keepdims=True)
    var = jnp.mean((y - mean) ** 2, axis=0, keepdims=True)
    y = (y - mean) / jnp.sqrt(var + EPS) * gamma[None, :] + beta[None, :]
    return jnp.transpose(y.reshape(N, H, W, Cout), (0, 3, 1, 2))


if __name__ == "__main__":
    key = jax.random.PRNGKey(0)
    k_x, k_w = jax.random.split(key)

    # Input consistent with the module: [1, 2048, 5, 5]
    x = jax.random.normal(k_x, (1, C_IN, 5, 5), dtype=jnp.float32)

    # Deterministic parameter init (Conv2d weight random, BN affine defaults).
    w_conv = jax.random.normal(k_w, (C_OUT, C_IN, 1, 1), dtype=jnp.float32) * 0.02
    gamma = jnp.ones((C_OUT,), dtype=jnp.float32)   # BatchNorm2d weight init
    beta = jnp.zeros((C_OUT,), dtype=jnp.float32)   # BatchNorm2d bias init

    out = conv1x1_batchnorm(x, w_conv, gamma, beta)
    jax.block_until_ready(out)
    assert out.shape == (1, C_OUT, 5, 5), out.shape

    # Tight check: reference uses the same bf16-rounded operands the kernel
    # feeds the MXU, isolating the Pallas implementation from the deliberate
    # bf16 operand storage.
    ref_bf16 = _reference(x, w_conv, gamma, beta, operand_dtype=jnp.bfloat16)
    assert jnp.allclose(out, ref_bf16, atol=1e-3, rtol=1e-3)

    # Loose sanity check against the full-f32 module semantics: bf16 operand
    # quantization perturbs the BN-normalized output only marginally.
    ref_f32 = _reference(x, w_conv, gamma, beta, operand_dtype=jnp.float32)
    assert jnp.allclose(out, ref_f32, atol=3e-2, rtol=3e-2)

    print("KERNEL_OK")
</pallas_src>

<mosaic_0001>
module attributes {stable_mosaic.version = 11 : i64} {
  func.func @_conv_bn_kernel(%arg0: i32, %arg1: memref<25x2048xbf16, #tpu.memory_space<vmem>>, %arg2: memref<2048x128xbf16, #tpu.memory_space<vmem>>, %arg3: memref<1x128xf32, #tpu.memory_space<vmem>>, %arg4: memref<1x128xf32, #tpu.memory_space<vmem>>, %arg5: memref<25x128xf32, #tpu.memory_space<vmem>>) attributes {dimension_semantics = [#tpu.dimension_semantics<parallel>], iteration_bounds = array<i64: 3>, scalar_prefetch = 0 : i64, scratch_operands = 0 : i64, tpu.core_type = #tpu.core_type<tc>, window_params = [{pipeline_mode = #tpu.pipeline_mode<synchronous>, transform_indices = @transform_0, window_bounds = array<i64: 25, 2048>}, {transform_indices = @transform_1, window_bounds = array<i64: 2048, 128>}, {transform_indices = @transform_2, window_bounds = array<i64: 1, 128>}, {transform_indices = @transform_3, window_bounds = array<i64: 1, 128>}, {transform_indices = @transform_4, window_bounds = array<i64: 25, 128>}]} {
    %c0 = arith.constant 0 : index
    %c0_0 = arith.constant 0 : index
    %0 = vector.load %arg1[%c0, %c0_0] : memref<25x2048xbf16, #tpu.memory_space<vmem>>, vector<25x2048xbf16>
    %c0_1 = arith.constant 0 : index
    %c0_2 = arith.constant 0 : index
    %1 = vector.load %arg2[%c0_1, %c0_2] : memref<2048x128xbf16, #tpu.memory_space<vmem>>, vector<2048x128xbf16>
    %cst = arith.constant dense<0.000000e+00> : vector<25x128xf32>
    %2 = tpu.matmul %0, %1, %cst {dimension_numbers = #tpu.dot_dimension_numbers<[1], [0], [0], [1], [0, 0, 1, 1], [], []>} : vector<25x2048xbf16>, vector<2048x128xbf16>, vector<25x128xf32> -> vector<25x128xf32>
    %cst_3 = arith.constant dense<0.000000e+00> : vector<128xf32>
    %3 = vector.multi_reduction <add>, %2, %cst_3 [0] : vector<25x128xf32> to vector<128xf32>
    %4 = vector.shape_cast %3 : vector<128xf32> to vector<1x128xf32>
    %cst_4 = arith.constant 4.000000e-02 : f32
    %5 = vector.broadcast %cst_4 : f32 to vector<1x128xf32>
    %6 = arith.mulf %4, %5 : vector<1x128xf32>
    %7 = vector.broadcast %6 : vector<1x128xf32> to vector<25x128xf32>
    %8 = arith.subf %2, %7 : vector<25x128xf32>
    %9 = arith.mulf %8, %8 : vector<25x128xf32>
    %cst_5 = arith.constant dense<0.000000e+00> : vector<128xf32>
    %10 = vector.multi_reduction <add>, %9, %cst_5 [0] : vector<25x128xf32> to vector<128xf32>
    %11 = vector.shape_cast %10 : vector<128xf32> to vector<1x128xf32>
    %cst_6 = arith.constant 4.000000e-02 : f32
    %12 = vector.broadcast %cst_6 : f32 to vector<1x128xf32>
    %13 = arith.mulf %11, %12 : vector<1x128xf32>
    %cst_7 = arith.constant 1.000000e-03 : f32
    %14 = vector.broadcast %cst_7 : f32 to vector<1x128xf32>
    %15 = arith.addf %13, %14 : vector<1x128xf32>
    %16 = math.rsqrt %15 : vector<1x128xf32>
    %c0_8 = arith.constant 0 : index
    %c0_9 = arith.constant 0 : index
    %17 = vector.load %arg3[%c0_8, %c0_9] : memref<1x128xf32, #tpu.memory_space<vmem>>, vector<1x128xf32>
    %18 = arith.mulf %16, %17 : vector<1x128xf32>
    %19 = vector.broadcast %18 : vector<1x128xf32> to vector<25x128xf32>
    %20 = arith.mulf %8, %19 : vector<25x128xf32>
    %c0_10 = arith.constant 0 : index
    %c0_11 = arith.constant 0 : index
    %21 = vector.load %arg4[%c0_10, %c0_11] : memref<1x128xf32, #tpu.memory_space<vmem>>, vector<1x128xf32>
    %22 = vector.broadcast %21 : vector<1x128xf32> to vector<25x128xf32>
    %23 = arith.addf %20, %22 : vector<25x128xf32>
    %c0_12 = arith.constant 0 : index
    %c0_13 = arith.constant 0 : index
    %24 = vector.load %arg5[%c0_12, %c0_13] : memref<25x128xf32, #tpu.memory_space<vmem>>, vector<25x128xf32>
    tpu.vector_store %arg5[%c0_12, %c0_13], %23 {strides = array<i32>} : memref<25x128xf32, #tpu.memory_space<vmem>>, vector<25x128xf32>,
    return
  }
  func.func @transform_0(%arg0: i32) -> (i32, i32) {
    %c0_i32 = arith.constant 0 : i32
    %c0_i32_0 = arith.constant 0 : i32
    %c0_i32_1 = arith.constant 0 : i32
    return %c0_i32, %c0_i32_0 : i32, i32
  }
  func.func @transform_1(%arg0: i32) -> (i32, i32) {
    %c0_i32 = arith.constant 0 : i32
    %c0_i32_0 = arith.constant 0 : i32
    return %c0_i32, %arg0 : i32, i32
  }
  func.func @transform_2(%arg0: i32) -> (i32, i32) {
    %c0_i32 = arith.constant 0 : i32
    %c0_i32_0 = arith.constant 0 : i32
    return %c0_i32, %arg0 : i32, i32
  }
  func.func @transform_3(%arg0: i32) -> (i32, i32) {
    %c0_i32 = arith.constant 0 : i32
    %c0_i32_0 = arith.constant 0 : i32
    return %c0_i32, %arg0 : i32, i32
  }
  func.func @transform_4(%arg0: i32) -> (i32, i32) {
    %c0_i32 = arith.constant 0 : i32
    %c0_i32_0 = arith.constant 0 : i32
    return %c0_i32, %arg0 : i32, i32
  }
}

</mosaic_0001>

<llo_original>
// kernel: tpu_custom_call.1
$region0: #{tpu_custom_call.1}
  #allocation0 [shape = 'u32[]', space=smem, size = 0x4, offset = 0x4, fixed_abs, tag = 'smem constant byte address 0x4 - core index']
  #allocation1 [shape = 'u32[144,128]{1,0:T(1,128)}', space=vmem, size = 0x12000, scoped, tag = 'internal scratch']
  %s0 = inlined_call_operand.hbm [shape: bf16[25,2048], index: 0, kind: input, shape index: {}]
  %s1 = inlined_call_operand.hbm [shape: bf16[2048,384], index: 1, kind: input, shape index: {}]
  %s2 = inlined_call_operand.hbm [shape: f32[1,384], index: 2, kind: input, shape index: {}]
  %s3 = inlined_call_operand.hbm [shape: f32[1,384], index: 3, kind: input, shape index: {}]
  %s4 = inlined_call_operand.hbm [shape: f32[25,384], index: 4, kind: output, shape index: {}]
  %s5 = sld [smem:[#allocation0]]
  $region65: #{tpu_custom_call.1} parent=0
    _
  %s7 = ssub.s32 1, %s5
  %s8 = scalar_select 0, %s7, %s5
  $region1: #{tpu_custom_call.1} parent=0
    #allocation2 [shape = 'u8[131072]{0}', space=vmem, size = 0x20000, scoped, tag = 'input window, operand 0, single buffered']
    #allocation3 [shape = 's32[2]{0}', space=sflag, size = 0x8, scoped, tag = 'scoped memory for tpu_custom_call.1']
    #allocation4 [shape = 's32[2]{0}', space=sflag, size = 0x8, scoped, tag = 'scoped memory for tpu_custom_call.1']
    #allocation5 [shape = 'u8[1048576]{0}', space=vmem, size = 0x100000, scoped, tag = 'input window, operand 1']
    #allocation6 [shape = 's32[2]{0}', space=sflag, size = 0x8, scoped, tag = 'scoped memory for tpu_custom_call.1']
    #allocation7 [shape = 'u8[1024]{0}', space=vmem, size = 0x400, scoped, tag = 'input window, operand 2']
    #allocation8 [shape = 'u8[1024]{0}', space=vmem, size = 0x400, scoped, tag = 'input window, operand 3']
    #allocation9 [shape = 's32[2]{0}', space=sflag, size = 0x8, scoped, tag = 'scoped memory for tpu_custom_call.1']
    #allocation10 [shape = 'u8[32768]{0}', space=vmem, size = 0x8000, scoped, tag = 'output window, operand 0']
    %9 = vsyncpa [#allocation3], 0
    %10 = vsyncpa [#allocation6], 0
    %s11 = scalar_lea.sflag [#allocation6], 1
    %12 = vsyncpa %s11, 0
    %13 = vsyncpa [#allocation9], 0
    %s14 = scalar_lea.sflag [#allocation9], 1
    %15 = vsyncpa %s14, 0
    %16 = vsyncpa [#allocation4], 0
    %s17 = scalar_lea.sflag [#allocation4], 1
    %18 = vsyncpa %s17, 0
    loop: start=0, step=1, limit=5
    $region2: #{tpu_custom_call.1} parent=1 // loop_pre_header
      _
    $region3: #{tpu_custom_call.1} parent=1 // loop_header
      %s20 = sphi 0, %s24
      %p21 = scmp.ge.s32.totalorder %s20, 5
      %s28 = sphi 0, %s28
      %s30 = sphi 0, %s28
      %s31 = sphi 0, %s30
      %s45 = sphi 0, %s31
      %s51 = sphi 0, %s53
      %s54 = sphi 0, %s51
      %s55 = sphi 0, %s54
      %s71 = sphi 0, %s55
      %s77 = sphi 0, %s79
      %s80 = sphi 0, %s77
      %s81 = sphi 0, %s80
      %s97 = sphi 0, %s81
      %s103 = sphi 0, %s105
      %s106 = sphi 0, %s103
      %s107 = sphi 0, %s106
      %s123 = sphi 0, %s107
      %s129 = sphi 0, %s131
      %s132 = sphi 0, %s129
      %s133 = sphi 0, %s132
      %s149 = sphi 0, %s133
    $region4: #{tpu_custom_call.1} parent=1 // loop_header_branch
      %23 = sbr.rel (%p21) target = $region8
    $region5: #{tpu_custom_call.1} parent=1 // loop_body
      %s25 = ssub.s32 %s20, 1
      %s26 = ssub.s32 %s20, 2
      %s27 = sadd.s32 %s20, 1
      %s29 = sadd.s32 %s28, 1
      %p32 = scmp.eq.s32.totalorder %s20, 2
      %p33 = scmp.ne.s32.totalorder %s28, %s30
      %p34 = scmp.eq.s32.totalorder %s20, 0
      %p35 = por %p33, %p34
      %p36 = scmp.ne.s32.totalorder %s28, %s30
      %p37 = scmp.eq.s32.totalorder %s25, 2
      %p38 = por %p36, %p37
      %p39 = scmp.ne.s32.totalorder %s30, %s31
      %p40 = scmp.eq.s32.totalorder %s25, 0
      %p41 = por %p39, %p40
      %p42 = scmp.ne.s32.totalorder %s30, %s31
      %p43 = scmp.eq.s32.totalorder %s26, 2
      %p44 = por %p42, %p43
      %p46 = scmp.ne.s32.totalorder %s31, %s45
      %p47 = scmp.eq.s32.totalorder %s26, 0
      %p48 = por %p46, %p47
      %s49 = ssub.s32 %s20, %s27
      %p50 = scmp.eq.s32.totalorder %s49, 0
      %s52 = sadd.s32 %s51, 1
      %s53 = scalar_select %p50, %s51, %s52
      %p56 = pneg %p50
      %p57 = scmp.eq.s32.totalorder %s20, 2
      %p58 = por %p56, %p57
      %p59 = scmp.ne.s32.totalorder %s51, %s54
      %p60 = scmp.eq.s32.totalorder %s20, 0
      %p61 = por %p59, %p60
      %p62 = scmp.ne.s32.totalorder %s51, %s54
      %p63 = scmp.eq.s32.totalorder %s25, 2
      %p64 = por %p62, %p63
      %p65 = scmp.ne.s32.totalorder %s54, %s55
      %p66 = scmp.eq.s32.totalorder %s25, 0
      %p67 = por %p65, %p66
      %p68 = scmp.ne.s32.totalorder %s54, %s55
      %p69 = scmp.eq.s32.totalorder %s26, 2
      %p70 = por %p68, %p69
      %p72 = scmp.ne.s32.totalorder %s55, %s71
      %p73 = scmp.eq.s32.totalorder %s26, 0
      %p74 = por %p72, %p73
      %s75 = ssub.s32 %s20, %s27
      %p76 = scmp.eq.s32.totalorder %s75, 0
      %s78 = sadd.s32 %s77, 1
      %s79 = scalar_select %p76, %s77, %s78
      %p82 = pneg %p76
      %p83 = scmp.eq.s32.totalorder %s20, 2
      %p84 = por %p82, %p83
      %p85 = scmp.ne.s32.totalorder %s77, %s80
      %p86 = scmp.eq.s32.totalorder %s20, 0
      %p87 = por %p85, %p86
      %p88 = scmp.ne.s32.totalorder %s77, %s80
      %p89 = scmp.eq.s32.totalorder %s25, 2
      %p90 = por %p88, %p89
      %p91 = scmp.ne.s32.totalorder %s80, %s81
      %p92 = scmp.eq.s32.totalorder %s25, 0
      %p93 = por %p91, %p92
      %p94 = scmp.ne.s32.totalorder %s80, %s81
      %p95 = scmp.eq.s32.totalorder %s26, 2
      %p96 = por %p94, %p95
      %p98 = scmp.ne.s32.totalorder %s81, %s97
      %p99 = scmp.eq.s32.totalorder %s26, 0
      %p100 = por %p98, %p99
      %s101 = ssub.s32 %s20, %s27
      %p102 = scmp.eq.s32.totalorder %s101, 0
      %s104 = sadd.s32 %s103, 1
      %s105 = scalar_select %p102, %s103, %s104
      %p108 = pneg %p102
      %p109 = scmp.eq.s32.totalorder %s20, 2
      %p110 = por %p108, %p109
      %p111 = scmp.ne.s32.totalorder %s103, %s106
      %p112 = scmp.eq.s32.totalorder %s20, 0
      %p113 = por %p111, %p112
      %p114 = scmp.ne.s32.totalorder %s103, %s106
      %p115 = scmp.eq.s32.totalorder %s25, 2
      %p116 = por %p114, %p115
      %p117 = scmp.ne.s32.totalorder %s106, %s107
      %p118 = scmp.eq.s32.totalorder %s25, 0
      %p119 = por %p117, %p118
      %p120 = scmp.ne.s32.totalorder %s106, %s107
      %p121 = scmp.eq.s32.totalorder %s26, 2
      %p122 = por %p120, %p121
      %p124 = scmp.ne.s32.totalorder %s107, %s123
      %p125 = scmp.eq.s32.totalorder %s26, 0
      %p126 = por %p124, %p125
      %s127 = ssub.s32 %s20, %s27
      %p128 = scmp.eq.s32.totalorder %s127, 0
      %s130 = sadd.s32 %s129, 1
      %s131 = scalar_select %p128, %s129, %s130
      %p134 = pneg %p128
      %p135 = scmp.eq.s32.totalorder %s20, 2
      %p136 = por %p134, %p135
      %p137 = scmp.ne.s32.totalorder %s129, %s132
      %p138 = scmp.eq.s32.totalorder %s20, 0
      %p139 = por %p137, %p138
      %p140 = scmp.ne.s32.totalorder %s129, %s132
      %p141 = scmp.eq.s32.totalorder %s25, 2
      %p142 = por %p140, %p141
      %p143 = scmp.ne.s32.totalorder %s132, %s133
      %p144 = scmp.eq.s32.totalorder %s25, 0
      %p145 = por %p143, %p144
      %p146 = scmp.ne.s32.totalorder %s132, %s133
      %p147 = scmp.eq.s32.totalorder %s26, 2
      %p148 = por %p146, %p147
      %p150 = scmp.ne.s32.totalorder %s133, %s149
      %p151 = scmp.eq.s32.totalorder %s26, 0
      %p152 = por %p150, %p151
      %p153 = scmp.le.s32.totalorder 1, %s20
      %p154 = scmp.lt.s32.totalorder %s20, 4
      %p155 = pnand %p153, %p154
      %p156 = pneg %p155
      // Predicated region
      $region9: #{tpu_custom_call.1} parent=5 // pred_check
        _
      $region10: #{tpu_custom_call.1} parent=5 // pred_check_branch
        %158 = sbr.rel (%p155) target = $region12
      $region11: #{tpu_custom_call.1} parent=5 // pred_region
        %s159 = ssub.s32 %s20, 1
        // Predicated region
        $region13: #{tpu_custom_call.1} parent=11 // pred_check
          %p160 = pneg %p41
        $region14: #{tpu_custom_call.1} parent=11 // pred_check_branch
          %162 = sbr.rel (%p160) target = $region16
        $region15: #{tpu_custom_call.1} parent=11 // pred_region
          %s164 = ssub.s32 4096, 4096
          %165 = vsyncadd [#allocation3], %s164
          %s166 = sshll.u32 [#allocation2], 4
          %s167 = int_to_ptr.vmem [resolvable:$true] %s166
          %172 = dma.hbm_to_vmem [thread:$0]  %s0, 4096, %s167, [#allocation3], 1024, 1024, 64
        $region16: #{tpu_custom_call.1} parent=11 // pred_fallthru
          _
      $region12: #{tpu_custom_call.1} parent=5 // pred_fallthru
        _
      %p173 = scmp.lt.s32.totalorder %s20, 3
      // Predicated region
      $region17: #{tpu_custom_call.1} parent=5 // pred_check
        %p174 = pneg %p173
      $region18: #{tpu_custom_call.1} parent=5 // pred_check_branch
        %176 = sbr.rel (%p174) target = $region20
      $region19: #{tpu_custom_call.1} parent=5 // pred_region
        // Predicated region
        $region21: #{tpu_custom_call.1} parent=19 // pred_check
          %p177 = pneg %p61
        $region22: #{tpu_custom_call.1} parent=19 // pred_check_branch
          %179 = sbr.rel (%p177) target = $region24
        $region23: #{tpu_custom_call.1} parent=19 // pred_region
          %s180 = sand.u32 %s20, 1
          %s181 = scalar_lea.sflag [#allocation6], %s180
          %s182 = sand.u32 %s51, 1
          %s183 = smul.addr %s182, 1024
          %s184 = scalar_lea.vmem [#allocation5], %s183
          %s186 = ssub.s32 16384, 16384
          %187 = vsyncadd %s181, %s186
          %s188 = smul.addr %s20, 64
          %s189 = scalar_lea.hbm %s1, %s188
          %s190 = sshll.u32 %s184, 4
          %s191 = int_to_ptr.vmem [resolvable:$true] %s190
          %196 = dma.hbm_to_vmem [thread:$0]  %s189, 16384, %s191, %s181, 192, 64, 4
        $region24: #{tpu_custom_call.1} parent=19 // pred_fallthru
          _
        // Predicated region
        $region25: #{tpu_custom_call.1} parent=19 // pred_check
          %p197 = pneg %p87
        $region26: #{tpu_custom_call.1} parent=19 // pred_check_branch
          %199 = sbr.rel (%p197) target = $region28
        $region27: #{tpu_custom_call.1} parent=19 // pred_region
          %s200 = sand.u32 %s20, 1
          %s201 = scalar_lea.sflag [#allocation6], %s200
          %s202 = sand.u32 %s77, 1
          %s203 = scalar_lea.vmem [#allocation7], %s202
          %s205 = ssub.s32 16, 16
          %206 = vsyncadd %s201, %s205
          %s207 = smul.addr %s20, 16
          %s208 = scalar_lea.hbm %s2, %s207
          %s210 = sshll.u32 %s203, 4
          %s211 = int_to_ptr.vmem [resolvable:$true] %s210
          %213 = dma.hbm_to_vmem [thread:$0]  %s208, 16, %s211, %s201
        $region28: #{tpu_custom_call.1} parent=19 // pred_fallthru
          _
        // Predicated region
        $region29: #{tpu_custom_call.1} parent=19 // pred_check
          %p214 = pneg %p113
        $region30: #{tpu_custom_call.1} parent=19 // pred_check_branch
          %216 = sbr.rel (%p214) target = $region32
        $region31: #{tpu_custom_call.1} parent=19 // pred_region
          %s217 = sand.u32 %s103, 1
          %s218 = scalar_lea.sflag [#allocation9], %s217
          %s219 = sand.u32 %s103, 1
          %s220 = scalar_lea.vmem [#allocation8], %s219
          %s222 = ssub.s32 16, 16
          %223 = vsyncadd %s218, %s222
          %s224 = smul.addr %s20, 16
          %s225 = scalar_lea.hbm %s3, %s224
          %s227 = sshll.u32 %s220, 4
          %s228 = int_to_ptr.vmem [resolvable:$true] %s227
          %230 = dma.hbm_to_vmem [thread:$0]  %s225, 16, %s228, %s218
        $region32: #{tpu_custom_call.1} parent=19 // pred_fallthru
          _
      $region20: #{tpu_custom_call.1} parent=5 // pred_fallthru
        _
      %p231 = scmp.le.s32.totalorder 1, %s20
      %p232 = scmp.lt.s32.totalorder %s20, 4
      %p233 = pnand %p231, %p232
      %p234 = pneg %p233
      // Predicated region
      $region33: #{tpu_custom_call.1} parent=5 // pred_check
        _
      $region34: #{tpu_custom_call.1} parent=5 // pred_check_branch
        %236 = sbr.rel (%p233) target = $region36
      $region35: #{tpu_custom_call.1} parent=5 // pred_region
        %s237 = ssub.s32 %s20, 1
        // Predicated region
        $region37: #{tpu_custom_call.1} parent=35 // pred_check
          %p238 = pneg %p41
        $region38: #{tpu_custom_call.1} parent=35 // pred_check_branch
          %240 = sbr.rel (%p238) target = $region40
        $region39: #{tpu_custom_call.1} parent=35 // pred_region
          %241 = dma.done [#allocation3], 4096
        $region40: #{tpu_custom_call.1} parent=35 // pred_fallthru
          _
        %s242 = sand.u32 %s25, 1
        %s243 = scalar_lea.sflag [#allocation6], %s242
        %s244 = sand.u32 %s54, 1
        %s245 = smul.addr %s244, 1024
        %s246 = scalar_lea.vmem [#allocation5], %s245
        // Predicated region
        $region41: #{tpu_custom_call.1} parent=35 // pred_check
          %p247 = pneg %p67
        $region42: #{tpu_custom_call.1} parent=35 // pred_check_branch
          %249 = sbr.rel (%p247) target = $region44
        $region43: #{tpu_custom_call.1} parent=35 // pred_region
          %250 = dma.done %s243, 16384
        $region44: #{tpu_custom_call.1} parent=35 // pred_fallthru
          _
        %s251 = sand.u32 %s25, 1
        %s252 = scalar_lea.sflag [#allocation6], %s251
        %s253 = sand.u32 %s80, 1
        %s254 = scalar_lea.vmem [#allocation7], %s253
        // Predicated region
        $region45: #{tpu_custom_call.1} parent=35 // pred_check
          %p255 = pneg %p93
        $region46: #{tpu_custom_call.1} parent=35 // pred_check_branch
          %257 = sbr.rel (%p255) target = $region48
        $region47: #{tpu_custom_call.1} parent=35 // pred_region
          %258 = dma.done %s252, 16
        $region48: #{tpu_custom_call.1} parent=35 // pred_fallthru
          _
        %s259 = sand.u32 %s106, 1
        %s260 = scalar_lea.sflag [#allocation9], %s259
        %s261 = sand.u32 %s106, 1
        %s262 = scalar_lea.vmem [#allocation8], %s261
        // Predicated region
        $region49: #{tpu_custom_call.1} parent=35 // pred_check
          %p263 = pneg %p119
        $region50: #{tpu_custom_call.1} parent=35 // pred_check_branch
          %265 = sbr.rel (%p263) target = $region52
        $region51: #{tpu_custom_call.1} parent=35 // pred_region
          %266 = dma.done %s260, 16
        $region52: #{tpu_custom_call.1} parent=35 // pred_fallthru
          _
        %p267 = pneg %p41
        %p268 = pneg %p38
        %s269 = sand.u32 %s25, 1
        %s270 = scalar_lea.sflag [#allocation6], %s269
        %s271 = sand.u32 %s54, 1
        %s272 = smul.addr %s271, 1024
        %s273 = scalar_lea.vmem [#allocation5], %s272
        %p274 = pneg %p67
        %p275 = pneg %p64
        %s276 = sand.u32 %s25, 1
        %s277 = scalar_lea.sflag [#allocation6], %s276
        %s278 = sand.u32 %s80, 1
        %s279 = scalar_lea.vmem [#allocation7], %s278
        %p280 = pneg %p93
        %p281 = pneg %p90
        %s282 = sand.u32 %s106, 1
        %s283 = scalar_lea.sflag [#allocation9], %s282
        %s284 = sand.u32 %s106, 1
        %s285 = scalar_lea.vmem [#allocation8], %s284
        %p286 = pneg %p119
        %p287 = pneg %p116
        %p288 = pneg %p145
        %p289 = pneg %p142
        %s290 = sand.u32 %s132, 1
        %s291 = scalar_lea.sflag [#allocation4], %s290
        %s292 = sand.u32 %s132, 1
        %s293 = smul.addr %s292, 32
        %s294 = scalar_lea.vmem [#allocation10], %s293
        %v296 = vld [vmem:[#allocation2] sm:$0xff]
        %v297 = vld [vmem:[#allocation2 + $0x8] sm:$0xff]
        %v298 = vld [vmem:[#allocation2 + $0x10] sm:$0xff]
        %v299 = vld [vmem:[#allocation2 + $0x18] sm:$0xff]
        %v300 = vld [vmem:[#allocation2 + $0x20] sm:$0xff]
        %v301 = vld [vmem:[#allocation2 + $0x28] sm:$0xff]
        %v302 = vld [vmem:[#allocation2 + $0x30] sm:$0xff]
        %v303 = vld [vmem:[#allocation2 + $0x38] sm:$0xff]
        %v304 = vld [vmem:[#allocation2 + $0x40] sm:$0xff]
        %v305 = vld [vmem:[#allocation2 + $0x48] sm:$0xff]
        %v306 = vld [vmem:[#allocation2 + $0x50] sm:$0xff]
        %v307 = vld [vmem:[#allocation2 + $0x58] sm:$0xff]
        %v308 = vld [vmem:[#allocation2 + $0x60] sm:$0xff]
        %v309 = vld [vmem:[#allocation2 + $0x68] sm:$0xff]
        %v310 = vld [vmem:[#allocation2 + $0x70] sm:$0xff]
        %v311 = vld [vmem:[#allocation2 + $0x78] sm:$0xff]
        %v312 = vld [vmem:[#allocation2 + $0x80] sm:$0xff]
        %v313 = vld [vmem:[#allocation2 + $0x88] sm:$0xff]
        %v314 = vld [vmem:[#allocation2 + $0x90] sm:$0xff]
        %v315 = vld [vmem:[#allocation2 + $0x98] sm:$0xff]
        %v316 = vld [vmem:[#allocation2 + $0xa0] sm:$0xff]
        %v317 = vld [vmem:[#allocation2 + $0xa8] sm:$0xff]
        %v318 = vld [vmem:[#allocation2 + $0xb0] sm:$0xff]
        %v319 = vld [vmem:[#allocation2 + $0xb8] sm:$0xff]
        %v320 = vld [vmem:[#allocation2 + $0xc0] sm:$0x11]
        %v321 = vld [vmem:[#allocation2 + $0xc8] sm:$0x11]
        %v322 = vld [vmem:[#allocation2 + $0xd0] sm:$0x11]
        %v323 = vld [vmem:[#allocation2 + $0xd8] sm:$0x11]
        %v324 = vld [vmem:[#allocation2 + $0xe0] sm:$0x11]
        %v325 = vld [vmem:[#allocation2 + $0xe8] sm:$0x11]
        %v326 = vld [vmem:[#allocation2 + $0xf0] sm:$0x11]
        %v327 = vld [vmem:[#allocation2 + $0xf8] sm:$0x11]
        %v328 = vld [vmem:[%s246] sm:$0xf]
        %v329 = vld [vmem:[%s246 + $0x4] sm:$0xf]
        %v330 = vld [vmem:[%s246 + $0x8] sm:$0xf]
        %v331 = vld [vmem:[%s246 + $0xc] sm:$0xf]
        %v332 = vld [vmem:[%s246 + $0x10] sm:$0xf]
        %v333 = vld [vmem:[%s246 + $0x14] sm:$0xf]
        %v334 = vld [vmem:[%s246 + $0x18] sm:$0xf]
        %v335 = vld [vmem:[%s246 + $0x1c] sm:$0xf]
        %v336 = vld [vmem:[%s246 + $0x20] sm:$0xf]
        %v337 = vld [vmem:[%s246 + $0x24] sm:$0xf]
        %v338 = vld [vmem:[%s246 + $0x28] sm:$0xf]
        %v339 = vld [vmem:[%s246 + $0x2c] sm:$0xf]
        %v340 = vld [vmem:[%s246 + $0x30] sm:$0xf]
        %v341 = vld [vmem:[%s246 + $0x34] sm:$0xf]
        %v342 = vld [vmem:[%s246 + $0x38] sm:$0xf]
        %v343 = vld [vmem:[%s246 + $0x3c] sm:$0xf]
        %v344 = vld [vmem:[%s246 + $0x40] sm:$0xf]
        %v345 = vld [vmem:[%s246 + $0x44] sm:$0xf]
        %v346 = vld [vmem:[%s246 + $0x48] sm:$0xf]
        %v347 = vld [vmem:[%s246 + $0x4c] sm:$0xf]
        %v348 = vld [vmem:[%s246 + $0x50] sm:$0xf]
        %v349 = vld [vmem:[%s246 + $0x54] sm:$0xf]
        %v350 = vld [vmem:[%s246 + $0x58] sm:$0xf]
        %v351 = vld [vmem:[%s246 + $0x5c] sm:$0xf]
        %v352 = vld [vmem:[%s246 + $0x60] sm:$0xf]
        %v353 = vld [vmem:[%s246 + $0x64] sm:$0xf]
        %v354 = vld [vmem:[%s246 + $0x68] sm:$0xf]
        %v355 = vld [vmem:[%s246 + $0x6c] sm:$0xf]
        %v356 = vld [vmem:[%s246 + $0x70] sm:$0xf]
        %v357 = vld [vmem:[%s246 + $0x74] sm:$0xf]
        %v358 = vld [vmem:[%s246 + $0x78] sm:$0xf]
        %v359 = vld [vmem:[%s246 + $0x7c] sm:$0xf]
        %v360 = vld [vmem:[%s246 + $0x80] sm:$0xf]
        %v361 = vld [vmem:[%s246 + $0x84] sm:$0xf]
        %v362 = vld [vmem:[%s246 + $0x88] sm:$0xf]
        %v363 = vld [vmem:[%s246 + $0x8c] sm:$0xf]
        %v364 = vld [vmem:[%s246 + $0x90] sm:$0xf]
        %v365 = vld [vmem:[%s246 + $0x94] sm:$0xf]
        %v366 = vld [vmem:[%s246 + $0x98] sm:$0xf]
        %v367 = vld [vmem:[%s246 + $0x9c] sm:$0xf]
        %v368 = vld [vmem:[%s246 + $0xa0] sm:$0xf]
        %v369 = vld [vmem:[%s246 + $0xa4] sm:$0xf]
        %v370 = vld [vmem:[%s246 + $0xa8] sm:$0xf]
        %v371 = vld [vmem:[%s246 + $0xac] sm:$0xf]
        %v372 = vld [vmem:[%s246 + $0xb0] sm:$0xf]
        %v373 = vld [vmem:[%s246 + $0xb4] sm:$0xf]
        %v374 = vld [vmem:[%s246 + $0xb8] sm:$0xf]
        %v375 = vld [vmem:[%s246 + $0xbc] sm:$0xf]
        %v376 = vld [vmem:[%s246 + $0xc0] sm:$0xf]
        %v377 = vld [vmem:[%s246 + $0xc4] sm:$0xf]
        %v378 = vld [vmem:[%s246 + $0xc8] sm:$0xf]
        %v379 = vld [vmem:[%s246 + $0xcc] sm:$0xf]
        %v380 = vld [vmem:[%s246 + $0xd0] sm:$0xf]
        %v381 = vld [vmem:[%s246 + $0xd4] sm:$0xf]
        %v382 = vld [vmem:[%s246 + $0xd8] sm:$0xf]
        %v383 = vld [vmem:[%s246 + $0xdc] sm:$0xf]
        %v384 = vld [vmem:[%s246 + $0xe0] sm:$0xf]
        %v385 = vld [vmem:[%s246 + $0xe4] sm:$0xf]
        %v386 = vld [vmem:[%s246 + $0xe8] sm:$0xf]
        %v387 = vld [vmem:[%s246 + $0xec] sm:$0xf]
        %v388 = vld [vmem:[%s246 + $0xf0] sm:$0xf]
        %v389 = vld [vmem:[%s246 + $0xf4] sm:$0xf]
        %v390 = vld [vmem:[%s246 + $0xf8] sm:$0xf]
        %v391 = vld [vmem:[%s246 + $0xfc] sm:$0xf]
        %v392 = vld [vmem:[%s246 + $0x100] sm:$0xf]
        %v393 = vld [vmem:[%s246 + $0x104] sm:$0xf]
        %v394 = vld [vmem:[%s246 + $0x108] sm:$0xf]
        %v395 = vld [vmem:[%s246 + $0x10c] sm:$0xf]
        %v396 = vld [vmem:[%s246 + $0x110] sm:$0xf]
        %v397 = vld [vmem:[%s246 + $0x114] sm:$0xf]
        %v398 = vld [vmem:[%s246 + $0x118] sm:$0xf]
        %v399 = vld [vmem:[%s246 + $0x11c] sm:$0xf]
        %v400 = vld [vmem:[%s246 + $0x120] sm:$0xf]
        %v401 = vld [vmem:[%s246 + $0x124] sm:$0xf]
        %v402 = vld [vmem:[%s246 + $0x128] sm:$0xf]
        %v403 = vld [vmem:[%s246 + $0x12c] sm:$0xf]
        %v404 = vld [vmem:[%s246 + $0x130] sm:$0xf]
        %v405 = vld [vmem:[%s246 + $0x134] sm:$0xf]
        %v406 = vld [vmem:[%s246 + $0x138] sm:$0xf]
        %v407 = vld [vmem:[%s246 + $0x13c] sm:$0xf]
        %v408 = vld [vmem:[%s246 + $0x140] sm:$0xf]
        %v409 = vld [vmem:[%s246 + $0x144] sm:$0xf]
        %v410 = vld [vmem:[%s246 + $0x148] sm:$0xf]
        %v411 = vld [vmem:[%s246 + $0x14c] sm:$0xf]
        %v412 = vld [vmem:[%s246 + $0x150] sm:$0xf]
        %v413 = vld [vmem:[%s246 + $0x154] sm:$0xf]
        %v414 = vld [vmem:[%s246 + $0x158] sm:$0xf]
        %v415 = vld [vmem:[%s246 + $0x15c] sm:$0xf]
        %v416 = vld [vmem:[%s246 + $0x160] sm:$0xf]
        %v417 = vld [vmem:[%s246 + $0x164] sm:$0xf]
        %v418 = vld [vmem:[%s246 + $0x168] sm:$0xf]
        %v419 = vld [vmem:[%s246 + $0x16c] sm:$0xf]
        %v420 = vld [vmem:[%s246 + $0x170] sm:$0xf]
        %v421 = vld [vmem:[%s246 + $0x174] sm:$0xf]
        %v422 = vld [vmem:[%s246 + $0x178] sm:$0xf]
        %v423 = vld [vmem:[%s246 + $0x17c] sm:$0xf]
        %v424 = vld [vmem:[%s246 + $0x180] sm:$0xf]
        %v425 = vld [vmem:[%s246 + $0x184] sm:$0xf]
        %v426 = vld [vmem:[%s246 + $0x188] sm:$0xf]
        %v427 = vld [vmem:[%s246 + $0x18c] sm:$0xf]
        %v428 = vld [vmem:[%s246 + $0x190] sm:$0xf]
        %v429 = vld [vmem:[%s246 + $0x194] sm:$0xf]
        %v430 = vld [vmem:[%s246 + $0x198] sm:$0xf]
        %v431 = vld [vmem:[%s246 + $0x19c] sm:$0xf]
        %v432 = vld [vmem:[%s246 + $0x1a0] sm:$0xf]
        %v433 = vld [vmem:[%s246 + $0x1a4] sm:$0xf]
        %v434 = vld [vmem:[%s246 + $0x1a8] sm:$0xf]
        %v435 = vld [vmem:[%s246 + $0x1ac] sm:$0xf]
        %v436 = vld [vmem:[%s246 + $0x1b0] sm:$0xf]
        %v437 = vld [vmem:[%s246 + $0x1b4] sm:$0xf]
        %v438 = vld [vmem:[%s246 + $0x1b8] sm:$0xf]
        %v439 = vld [vmem:[%s246 + $0x1bc] sm:$0xf]
        %v440 = vld [vmem:[%s246 + $0x1c0] sm:$0xf]
        %v441 = vld [vmem:[%s246 + $0x1c4] sm:$0xf]
        %v442 = vld [vmem:[%s246 + $0x1c8] sm:$0xf]
        %v443 = vld [vmem:[%s246 + $0x1cc] sm:$0xf]
        %v444 = vld [vmem:[%s246 + $0x1d0] sm:$0xf]
        %v445 = vld [vmem:[%s246 + $0x1d4] sm:$0xf]
        %v446 = vld [vmem:[%s246 + $0x1d8] sm:$0xf]
        %v447 = vld [vmem:[%s246 + $0x1dc] sm:$0xf]
        %v448 = vld [vmem:[%s246 + $0x1e0] sm:$0xf]
        %v449 = vld [vmem:[%s246 + $0x1e4] sm:$0xf]
        %v450 = vld [vmem:[%s246 + $0x1e8] sm:$0xf]
        %v451 = vld [vmem:[%s246 + $0x1ec] sm:$0xf]
        %v452 = vld [vmem:[%s246 + $0x1f0] sm:$0xf]
        %v453 = vld [vmem:[%s246 + $0x1f4] sm:$0xf]
        %v454 = vld [vmem:[%s246 + $0x1f8] sm:$0xf]
        %v455 = vld [vmem:[%s246 + $0x1fc] sm:$0xf]
        %v456 = vld [vmem:[%s246 + $0x200] sm:$0xf]
        %v457 = vld [vmem:[%s246 + $0x204] sm:$0xf]
        %v458 = vld [vmem:[%s246 + $0x208] sm:$0xf]
        %v459 = vld [vmem:[%s246 + $0x20c] sm:$0xf]
        %v460 = vld [vmem:[%s246 + $0x210] sm:$0xf]
        %v461 = vld [vmem:[%s246 + $0x214] sm:$0xf]
        %v462 = vld [vmem:[%s246 + $0x218] sm:$0xf]
        %v463 = vld [vmem:[%s246 + $0x21c] sm:$0xf]
        %v464 = vld [vmem:[%s246 + $0x220] sm:$0xf]
        %v465 = vld [vmem:[%s246 + $0x224] sm:$0xf]
        %v466 = vld [vmem:[%s246 + $0x228] sm:$0xf]
        %v467 = vld [vmem:[%s246 + $0x22c] sm:$0xf]
        %v468 = vld [vmem:[%s246 + $0x230] sm:$0xf]
        %v469 = vld [vmem:[%s246 + $0x234] sm:$0xf]
        %v470 = vld [vmem:[%s246 + $0x238] sm:$0xf]
        %v471 = vld [vmem:[%s246 + $0x23c] sm:$0xf]
        %v472 = vld [vmem:[%s246 + $0x240] sm:$0xf]
        %v473 = vld [vmem:[%s246 + $0x244] sm:$0xf]
        %v474 = vld [vmem:[%s246 + $0x248] sm:$0xf]
        %v475 = vld [vmem:[%s246 + $0x24c] sm:$0xf]
        %v476 = vld [vmem:[%s246 + $0x250] sm:$0xf]
        %v477 = vld [vmem:[%s246 + $0x254] sm:$0xf]
        %v478 = vld [vmem:[%s246 + $0x258] sm:$0xf]
        %v479 = vld [vmem:[%s246 + $0x25c] sm:$0xf]
        %v480 = vld [vmem:[%s246 + $0x260] sm:$0xf]
        %v481 = vld [vmem:[%s246 + $0x264] sm:$0xf]
        %v482 = vld [vmem:[%s246 + $0x268] sm:$0xf]
        %v483 = vld [vmem:[%s246 + $0x26c] sm:$0xf]
        %v484 = vld [vmem:[%s246 + $0x270] sm:$0xf]
        %v485 = vld [vmem:[%s246 + $0x274] sm:$0xf]
        %v486 = vld [vmem:[%s246 + $0x278] sm:$0xf]
        %v487 = vld [vmem:[%s246 + $0x27c] sm:$0xf]
        %v488 = vld [vmem:[%s246 + $0x280] sm:$0xf]
        %v489 = vld [vmem:[%s246 + $0x284] sm:$0xf]
        %v490 = vld [vmem:[%s246 + $0x288] sm:$0xf]
        %v491 = vld [vmem:[%s246 + $0x28c] sm:$0xf]
        %v492 = vld [vmem:[%s246 + $0x290] sm:$0xf]
        %v493 = vld [vmem:[%s246 + $0x294] sm:$0xf]
        %v494 = vld [vmem:[%s246 + $0x298] sm:$0xf]
        %v495 = vld [vmem:[%s246 + $0x29c] sm:$0xf]
        %v496 = vld [vmem:[%s246 + $0x2a0] sm:$0xf]
        %v497 = vld [vmem:[%s246 + $0x2a4] sm:$0xf]
        %v498 = vld [vmem:[%s246 + $0x2a8] sm:$0xf]
        %v499 = vld [vmem:[%s246 + $0x2ac] sm:$0xf]
        %v500 = vld [vmem:[%s246 + $0x2b0] sm:$0xf]
        %v501 = vld [vmem:[%s246 + $0x2b4] sm:$0xf]
        %v502 = vld [vmem:[%s246 + $0x2b8] sm:$0xf]
        %v503 = vld [vmem:[%s246 + $0x2bc] sm:$0xf]
        %v504 = vld [vmem:[%s246 + $0x2c0] sm:$0xf]
        %v505 = vld [vmem:[%s246 + $0x2c4] sm:$0xf]
        %v506 = vld [vmem:[%s246 + $0x2c8] sm:$0xf]
        %v507 = vld [vmem:[%s246 + $0x2cc] sm:$0xf]
        %v508 = vld [vmem:[%s246 + $0x2d0] sm:$0xf]
        %v509 = vld [vmem:[%s246 + $0x2d4] sm:$0xf]
        %v510 = vld [vmem:[%s246 + $0x2d8] sm:$0xf]
        %v511 = vld [vmem:[%s246 + $0x2dc] sm:$0xf]
        %v512 = vld [vmem:[%s246 + $0x2e0] sm:$0xf]
        %v513 = vld [vmem:[%s246 + $0x2e4] sm:$0xf]
        %v514 = vld [vmem:[%s246 + $0x2e8] sm:$0xf]
        %v515 = vld [vmem:[%s246 + $0x2ec] sm:$0xf]
        %v516 = vld [vmem:[%s246 + $0x2f0] sm:$0xf]
        %v517 = vld [vmem:[%s246 + $0x2f4] sm:$0xf]
        %v518 = vld [vmem:[%s246 + $0x2f8] sm:$0xf]
        %v519 = vld [vmem:[%s246 + $0x2fc] sm:$0xf]
        %v520 = vld [vmem:[%s246 + $0x300] sm:$0xf]
        %v521 = vld [vmem:[%s246 + $0x304] sm:$0xf]
        %v522 = vld [vmem:[%s246 + $0x308] sm:$0xf]
        %v523 = vld [vmem:[%s246 + $0x30c] sm:$0xf]
        %v524 = vld [vmem:[%s246 + $0x310] sm:$0xf]
        %v525 = vld [vmem:[%s246 + $0x314] sm:$0xf]
        %v526 = vld [vmem:[%s246 + $0x318] sm:$0xf]
        %v527 = vld [vmem:[%s246 + $0x31c] sm:$0xf]
        %v528 = vld [vmem:[%s246 + $0x320] sm:$0xf]
        %v529 = vld [vmem:[%s246 + $0x324] sm:$0xf]
        %v530 = vld [vmem:[%s246 + $0x328] sm:$0xf]
        %v531 = vld [vmem:[%s246 + $0x32c] sm:$0xf]
        %v532 = vld [vmem:[%s246 + $0x330] sm:$0xf]
        %v533 = vld [vmem:[%s246 + $0x334] sm:$0xf]
        %v534 = vld [vmem:[%s246 + $0x338] sm:$0xf]
        %v535 = vld [vmem:[%s246 + $0x33c] sm:$0xf]
        %v536 = vld [vmem:[%s246 + $0x340] sm:$0xf]
        %v537 = vld [vmem:[%s246 + $0x344] sm:$0xf]
        %v538 = vld [vmem:[%s246 + $0x348] sm:$0xf]
        %v539 = vld [vmem:[%s246 + $0x34c] sm:$0xf]
        %v540 = vld [vmem:[%s246 + $0x350] sm:$0xf]
        %v541 = vld [vmem:[%s246 + $0x354] sm:$0xf]
        %v542 = vld [vmem:[%s246 + $0x358] sm:$0xf]
        %v543 = vld [vmem:[%s246 + $0x35c] sm:$0xf]
        %v544 = vld [vmem:[%s246 + $0x360] sm:$0xf]
        %v545 = vld [vmem:[%s246 + $0x364] sm:$0xf]
        %v546 = vld [vmem:[%s246 + $0x368] sm:$0xf]
        %v547 = vld [vmem:[%s246 + $0x36c] sm:$0xf]
        %v548 = vld [vmem:[%s246 + $0x370] sm:$0xf]
        %v549 = vld [vmem:[%s246 + $0x374] sm:$0xf]
        %v550 = vld [vmem:[%s246 + $0x378] sm:$0xf]
        %v551 = vld [vmem:[%s246 + $0x37c] sm:$0xf]
        %v552 = vld [vmem:[%s246 + $0x380] sm:$0xf]
        %v553 = vld [vmem:[%s246 + $0x384] sm:$0xf]
        %v554 = vld [vmem:[%s246 + $0x388] sm:$0xf]
        %v555 = vld [vmem:[%s246 + $0x38c] sm:$0xf]
        %v556 = vld [vmem:[%s246 + $0x390] sm:$0xf]
        %v557 = vld [vmem:[%s246 + $0x394] sm:$0xf]
        %v558 = vld [vmem:[%s246 + $0x398] sm:$0xf]
        %v559 = vld [vmem:[%s246 + $0x39c] sm:$0xf]
        %v560 = vld [vmem:[%s246 + $0x3a0] sm:$0xf]
        %v561 = vld [vmem:[%s246 + $0x3a4] sm:$0xf]
        %v562 = vld [vmem:[%s246 + $0x3a8] sm:$0xf]
        %v563 = vld [vmem:[%s246 + $0x3ac] sm:$0xf]
        %v564 = vld [vmem:[%s246 + $0x3b0] sm:$0xf]
        %v565 = vld [vmem:[%s246 + $0x3b4] sm:$0xf]
        %v566 = vld [vmem:[%s246 + $0x3b8] sm:$0xf]
        %v567 = vld [vmem:[%s246 + $0x3bc] sm:$0xf]
        %v568 = vld [vmem:[%s246 + $0x3c0] sm:$0xf]
        %v569 = vld [vmem:[%s246 + $0x3c4] sm:$0xf]
        %v570 = vld [vmem:[%s246 + $0x3c8] sm:$0xf]
        %v571 = vld [vmem:[%s246 + $0x3cc] sm:$0xf]
        %v572 = vld [vmem:[%s246 + $0x3d0] sm:$0xf]
        %v573 = vld [vmem:[%s246 + $0x3d4] sm:$0xf]
        %v574 = vld [vmem:[%s246 + $0x3d8] sm:$0xf]
        %v575 = vld [vmem:[%s246 + $0x3dc] sm:$0xf]
        %v576 = vld [vmem:[%s246 + $0x3e0] sm:$0xf]
        %v577 = vld [vmem:[%s246 + $0x3e4] sm:$0xf]
        %v578 = vld [vmem:[%s246 + $0x3e8] sm:$0xf]
        %v579 = vld [vmem:[%s246 + $0x3ec] sm:$0xf]
        %v580 = vld [vmem:[%s246 + $0x3f0] sm:$0xf]
        %v581 = vld [vmem:[%s246 + $0x3f4] sm:$0xf]
        %v582 = vld [vmem:[%s246 + $0x3f8] sm:$0xf]
        %v583 = vld [vmem:[%s246 + $0x3fc] sm:$0xf]
        %v616 = vunpack.c.l.b16 %v296
        %v617 = vunpack.c.h.b16 %v296
        %v618 = vunpack.c.l.b16 %v297
        %v619 = vunpack.c.h.b16 %v297
        %v620 = vunpack.c.l.b16 %v298
        %v621 = vunpack.c.h.b16 %v298
        %v622 = vunpack.c.l.b16 %v299
        %v623 = vunpack.c.h.b16 %v299
        %v624 = vunpack.c.l.b16 %v300
        %v625 = vunpack.c.h.b16 %v300
        %v626 = vunpack.c.l.b16 %v301
        %v627 = vunpack.c.h.b16 %v301
        %v628 = vunpack.c.l.b16 %v302
        %v629 = vunpack.c.h.b16 %v302
        %v630 = vunpack.c.l.b16 %v303
        %v631 = vunpack.c.h.b16 %v303
        %v632 = vunpack.c.l.b16 %v304
        %v633 = vunpack.c.h.b16 %v304
        %v634 = vunpack.c.l.b16 %v305
        %v635 = vunpack.c.h.b16 %v305
        %v636 = vunpack.c.l.b16 %v306
        %v637 = vunpack.c.h.b16 %v306
        %v638 = vunpack.c.l.b16 %v307
        %v639 = vunpack.c.h.b16 %v307
        %v640 = vunpack.c.l.b16 %v308
        %v641 = vunpack.c.h.b16 %v308
        %v642 = vunpack.c.l.b16 %v309
        %v643 = vunpack.c.h.b16 %v309
        %v644 = vunpack.c.l.b16 %v310
        %v645 = vunpack.c.h.b16 %v310
        %v646 = vunpack.c.l.b16 %v311
        %v647 = vunpack.c.h.b16 %v311
        %v648 = vunpack.c.l.b16 %v312
        %v649 = vunpack.c.h.b16 %v312
        %v650 = vunpack.c.l.b16 %v313
        %v651 = vunpack.c.h.b16 %v313
        %v652 = vunpack.c.l.b16 %v314
        %v653 = vunpack.c.h.b16 %v314
        %v654 = vunpack.c.l.b16 %v315
        %v655 = vunpack.c.h.b16 %v315
        %v656 = vunpack.c.l.b16 %v316
        %v657 = vunpack.c.h.b16 %v316
        %v658 = vunpack.c.l.b16 %v317
        %v659 = vunpack.c.h.b16 %v317
        %v660 = vunpack.c.l.b16 %v318
        %v661 = vunpack.c.h.b16 %v318
        %v662 = vunpack.c.l.b16 %v319
        %v663 = vunpack.c.h.b16 %v319
        %v664 = vunpack.c.l.b16 %v320
        %v665 = vunpack.c.h.b16 %v320
        %v666 = vunpack.c.l.b16 %v321
        %v667 = vunpack.c.h.b16 %v321
        %v668 = vunpack.c.l.b16 %v322
        %v669 = vunpack.c.h.b16 %v322
        %v670 = vunpack.c.l.b16 %v323
        %v671 = vunpack.c.h.b16 %v323
        %v672 = vunpack.c.l.b16 %v324
        %v673 = vunpack.c.h.b16 %v324
        %v674 = vunpack.c.l.b16 %v325
        %v675 = vunpack.c.h.b16 %v325
        %v676 = vunpack.c.l.b16 %v326
        %v677 = vunpack.c.h.b16 %v326
        %v678 = vunpack.c.l.b16 %v327
        %v679 = vunpack.c.h.b16 %v327
        %v680 = vpack.c.b16 %v632, %v616
        %v681 = vpack.c.b16 %v633, %v617
        %v682 = vpack.c.b16 %v634, %v618
        %v683 = vpack.c.b16 %v635, %v619
        %v684 = vpack.c.b16 %v636, %v620
        %v685 = vpack.c.b16 %v637, %v621
        %v686 = vpack.c.b16 %v638, %v622
        %v687 = vpack.c.b16 %v639, %v623
        %v688 = vpack.c.b16 %v640, %v624
        %v689 = vpack.c.b16 %v641, %v625
        %v690 = vpack.c.b16 %v642, %v626
        %v691 = vpack.c.b16 %v643, %v627
        %v692 = vpack.c.b16 %v644, %v628
        %v693 = vpack.c.b16 %v645, %v629
        %v694 = vpack.c.b16 %v646, %v630
        %v695 = vpack.c.b16 %v647, %v631
        %v696 = vpack.c.b16 %v664, %v648
        %v697 = vpack.c.b16 %v665, %v649
        %v698 = vpack.c.b16 %v666, %v650
        %v699 = vpack.c.b16 %v667, %v651
        %v700 = vpack.c.b16 %v668, %v652
        %v701 = vpack.c.b16 %v669, %v653
        %v702 = vpack.c.b16 %v670, %v654
        %v703 = vpack.c.b16 %v671, %v655
        %v704 = vpack.c.b16 %v672, %v656
        %v705 = vpack.c.b16 %v673, %v657
        %v706 = vpack.c.b16 %v674, %v658
        %v707 = vpack.c.b16 %v675, %v659
        %v708 = vpack.c.b16 %v676, %v660
        %v709 = vpack.c.b16 %v677, %v661
        %v710 = vpack.c.b16 %v678, %v662
        %v711 = vpack.c.b16 %v679, %v663
        %v1000 = vunpack.c.l.b16 %v328
        %v1001 = vunpack.c.l.b16 %v329
        %v1002 = vunpack.c.l.b16 %v330
        %v1003 = vunpack.c.l.b16 %v331
        %v1004 = vunpack.c.l.b16 %v332
        %v1005 = vunpack.c.l.b16 %v333
        %v1006 = vunpack.c.l.b16 %v334
        %v1007 = vunpack.c.l.b16 %v335
        %v1008 = vunpack.c.l.b16 %v336
        %v1009 = vunpack.c.l.b16 %v337
        %v1010 = vunpack.c.l.b16 %v338
        %v1011 = vunpack.c.l.b16 %v339
        %v1012 = vunpack.c.l.b16 %v340
        %v1013 = vunpack.c.l.b16 %v341
        %v1014 = vunpack.c.l.b16 %v342
        %v1015 = vunpack.c.l.b16 %v343
        %v1016 = vunpack.c.l.b16 %v344
        %v1017 = vunpack.c.l.b16 %v345
        %v1018 = vunpack.c.l.b16 %v346
        %v1019 = vunpack.c.l.b16 %v347
        %v1020 = vunpack.c.l.b16 %v348
        %v1021 = vunpack.c.l.b16 %v349
        %v1022 = vunpack.c.l.b16 %v350
        %v1023 = vunpack.c.l.b16 %v351
        %v1024 = vunpack.c.l.b16 %v352
        %v1025 = vunpack.c.l.b16 %v353
        %v1026 = vunpack.c.l.b16 %v354
        %v1027 = vunpack.c.l.b16 %v355
        %v1028 = vunpack.c.l.b16 %v356
        %v1029 = vunpack.c.l.b16 %v357
        %v1030 = vunpack.c.l.b16 %v358
        %v1031 = vunpack.c.l.b16 %v359
        %v1032 = vunpack.c.l.b16 %v360
        %v1033 = vunpack.c.l.b16 %v361
        %v1034 = vunpack.c.l.b16 %v362
        %v1035 = vunpack.c.l.b16 %v363
        %v1036 = vunpack.c.l.b16 %v364
        %v1037 = vunpack.c.l.b16 %v365
        %v1038 = vunpack.c.l.b16 %v366
        %v1039 = vunpack.c.l.b16 %v367
        %v1040 = vunpack.c.l.b16 %v368
        %v1041 = vunpack.c.l.b16 %v369
        %v1042 = vunpack.c.l.b16 %v370
        %v1043 = vunpack.c.l.b16 %v371
        %v1044 = vunpack.c.l.b16 %v372
        %v1045 = vunpack.c.l.b16 %v373
        %v1046 = vunpack.c.l.b16 %v374
        %v1047 = vunpack.c.l.b16 %v375
        %v1048 = vunpack.c.l.b16 %v376
        %v1049 = vunpack.c.l.b16 %v377
        %v1050 = vunpack.c.l.b16 %v378
        %v1051 = vunpack.c.l.b16 %v379
        %v1052 = vunpack.c.l.b16 %v380
        %v1053 = vunpack.c.l.b16 %v381
        %v1054 = vunpack.c.l.b16 %v382
        %v1055 = vunpack.c.l.b16 %v383
        %v1056 = vunpack.c.l.b16 %v384
        %v1057 = vunpack.c.l.b16 %v385
        %v1058 = vunpack.c.l.b16 %v386
        %v1059 = vunpack.c.l.b16 %v387
        %v1060 = vunpack.c.l.b16 %v388
        %v1061 = vunpack.c.l.b16 %v389
        %v1062 = vunpack.c.l.b16 %v390
        %v1063 = vunpack.c.l.b16 %v391
        %v1064 = vunpack.c.l.b16 %v392
        %v1065 = vunpack.c.l.b16 %v393
        %v1066 = vunpack.c.l.b16 %v394
        %v1067 = vunpack.c.l.b16 %v395
        %v1068 = vunpack.c.l.b16 %v396
        %v1069 = vunpack.c.l.b16 %v397
        %v1070 = vunpack.c.l.b16 %v398
        %v1071 = vunpack.c.l.b16 %v399
        %v1072 = vunpack.c.l.b16 %v400
        %v1073 = vunpack.c.l.b16 %v401
        %v1074 = vunpack.c.l.b16 %v402
        %v1075 = vunpack.c.l.b16 %v403
        %v1076 = vunpack.c.l.b16 %v404
        %v1077 = vunpack.c.l.b16 %v405
        %v1078 = vunpack.c.l.b16 %v406
        %v1079 = vunpack.c.l.b16 %v407
        %v1080 = vunpack.c.l.b16 %v408
        %v1081 = vunpack.c.l.b16 %v409
        %v1082 = vunpack.c.l.b16 %v410
        %v1083 = vunpack.c.l.b16 %v411
        %v1084 = vunpack.c.l.b16 %v412
        %v1085 = vunpack.c.l.b16 %v413
        %v1086 = vunpack.c.l.b16 %v414
        %v1087 = vunpack.c.l.b16 %v415
        %v1088 = vunpack.c.l.b16 %v416
        %v1089 = vunpack.c.l.b16 %v417
        %v1090 = vunpack.c.l.b16 %v418
        %v1091 = vunpack.c.l.b16 %v419
        %v1092 = vunpack.c.l.b16 %v420
        %v1093 = vunpack.c.l.b16 %v421
        %v1094 = vunpack.c.l.b16 %v422
        %v1095 = vunpack.c.l.b16 %v423
        %v1096 = vunpack.c.l.b16 %v424
        %v1097 = vunpack.c.l.b16 %v425
        %v1098 = vunpack.c.l.b16 %v426
        %v1099 = vunpack.c.l.b16 %v427
        %v1100 = vunpack.c.l.b16 %v428
        %v1101 = vunpack.c.l.b16 %v429
        %v1102 = vunpack.c.l.b16 %v430
        %v1103 = vunpack.c.l.b16 %v431
        %v1104 = vunpack.c.l.b16 %v432
        %v1105 = vunpack.c.l.b16 %v433
        %v1106 = vunpack.c.l.b16 %v434
        %v1107 = vunpack.c.l.b16 %v435
        %v1108 = vunpack.c.l.b16 %v436
        %v1109 = vunpack.c.l.b16 %v437
        %v1110 = vunpack.c.l.b16 %v438
        %v1111 = vunpack.c.l.b16 %v439
        %v1112 = vunpack.c.l.b16 %v440
        %v1113 = vunpack.c.l.b16 %v441
        %v1114 = vunpack.c.l.b16 %v442
        %v1115 = vunpack.c.l.b16 %v443
        %v1116 = vunpack.c.l.b16 %v444
        %v1117 = vunpack.c.l.b16 %v445
        %v1118 = vunpack.c.l.b16 %v446
        %v1119 = vunpack.c.l.b16 %v447
        %v1120 = vunpack.c.l.b16 %v448
        %v1121 = vunpack.c.l.b16 %v449
        %v1122 = vunpack.c.l.b16 %v450
        %v1123 = vunpack.c.l.b16 %v451
        %v1124 = vunpack.c.l.b16 %v452
        %v1125 = vunpack.c.l.b16 %v453
        %v1126 = vunpack.c.l.b16 %v454
        %v1127 = vunpack.c.l.b16 %v455
        %v1128 = vunpack.c.l.b16 %v456
        %v1129 = vunpack.c.l.b16 %v457
        %v1130 = vunpack.c.l.b16 %v458
        %v1131 = vunpack.c.l.b16 %v459
        %v1132 = vunpack.c.l.b16 %v460
        %v1133 = vunpack.c.l.b16 %v461
        %v1134 = vunpack.c.l.b16 %v462
        %v1135 = vunpack.c.l.b16 %v463
        %v1136 = vunpack.c.l.b16 %v464
        %v1137 = vunpack.c.l.b16 %v465
        %v1138 = vunpack.c.l.b16 %v466
        %v1139 = vunpack.c.l.b16 %v467
        %v1140 = vunpack.c.l.b16 %v468
        %v1141 = vunpack.c.l.b16 %v469
        %v1142 = vunpack.c.l.b16 %v470
        %v1143 = vunpack.c.l.b16 %v471
        %v1144 = vunpack.c.l.b16 %v472
        %v1145 = vunpack.c.l.b16 %v473
        %v1146 = vunpack.c.l.b16 %v474
        %v1147 = vunpack.c.l.b16 %v475
        %v1148 = vunpack.c.l.b16 %v476
        %v1149 = vunpack.c.l.b16 %v477
        %v1150 = vunpack.c.l.b16 %v478
        %v1151 = vunpack.c.l.b16 %v479
        %v1152 = vunpack.c.l.b16 %v480
        %v1153 = vunpack.c.l.b16 %v481
        %v1154 = vunpack.c.l.b16 %v482
        %v1155 = vunpack.c.l.b16 %v483
        %v1156 = vunpack.c.l.b16 %v484
        %v1157 = vunpack.c.l.b16 %v485
        %v1158 = vunpack.c.l.b16 %v486
        %v1159 = vunpack.c.l.b16 %v487
        %v1160 = vunpack.c.l.b16 %v488
        %v1161 = vunpack.c.l.b16 %v489
        %v1162 = vunpack.c.l.b16 %v490
        %v1163 = vunpack.c.l.b16 %v491
        %v1164 = vunpack.c.l.b16 %v492
        %v1165 = vunpack.c.l.b16 %v493
        %v1166 = vunpack.c.l.b16 %v494
        %v1167 = vunpack.c.l.b16 %v495
        %v1168 = vunpack.c.l.b16 %v496
        %v1169 = vunpack.c.l.b16 %v497
        %v1170 = vunpack.c.l.b16 %v498
        %v1171 = vunpack.c.l.b16 %v499
        %v1172 = vunpack.c.l.b16 %v500
        %v1173 = vunpack.c.l.b16 %v501
        %v1174 = vunpack.c.l.b16 %v502
        %v1175 = vunpack.c.l.b16 %v503
        %v1176 = vunpack.c.l.b16 %v504
        %v1177 = vunpack.c.l.b16 %v505
        %v1178 = vunpack.c.l.b16 %v506
        %v1179 = vunpack.c.l.b16 %v507
        %v1180 = vunpack.c.l.b16 %v508
        %v1181 = vunpack.c.l.b16 %v509
        %v1182 = vunpack.c.l.b16 %v510
        %v1183 = vunpack.c.l.b16 %v511
        %v1184 = vunpack.c.l.b16 %v512
        %v1185 = vunpack.c.l.b16 %v513
        %v1186 = vunpack.c.l.b16 %v514
        %v1187 = vunpack.c.l.b16 %v515
        %v1188 = vunpack.c.l.b16 %v516
        %v1189 = vunpack.c.l.b16 %v517
        %v1190 = vunpack.c.l.b16 %v518
        %v1191 = vunpack.c.l.b16 %v519
        %v1192 = vunpack.c.l.b16 %v520
        %v1193 = vunpack.c.l.b16 %v521
        %v1194 = vunpack.c.l.b16 %v522
        %v1195 = vunpack.c.l.b16 %v523
        %v1196 = vunpack.c.l.b16 %v524
        %v1197 = vunpack.c.l.b16 %v525
        %v1198 = vunpack.c.l.b16 %v526
        %v1199 = vunpack.c.l.b16 %v527
        %v1200 = vunpack.c.l.b16 %v528
        %v1201 = vunpack.c.l.b16 %v529
        %v1202 = vunpack.c.l.b16 %v530
        %v1203 = vunpack.c.l.b16 %v531
        %v1204 = vunpack.c.l.b16 %v532
        %v1205 = vunpack.c.l.b16 %v533
        %v1206 = vunpack.c.l.b16 %v534
        %v1207 = vunpack.c.l.b16 %v535
        %v1208 = vunpack.c.l.b16 %v536
        %v1209 = vunpack.c.l.b16 %v537
        %v1210 = vunpack.c.l.b16 %v538
        %v1211 = vunpack.c.l.b16 %v539
        %v1212 = vunpack.c.l.b16 %v540
        %v1213 = vunpack.c.l.b16 %v541
        %v1214 = vunpack.c.l.b16 %v542
        %v1215 = vunpack.c.l.b16 %v543
        %v1216 = vunpack.c.l.b16 %v544
        %v1217 = vunpack.c.l.b16 %v545
        %v1218 = vunpack.c.l.b16 %v546
        %v1219 = vunpack.c.l.b16 %v547
        %v1220 = vunpack.c.l.b16 %v548
        %v1221 = vunpack.c.l.b16 %v549
        %v1222 = vunpack.c.l.b16 %v550
        %v1223 = vunpack.c.l.b16 %v551
        %v1224 = vunpack.c.l.b16 %v552
        %v1225 = vunpack.c.l.b16 %v553
        %v1226 = vunpack.c.l.b16 %v554
        %v1227 = vunpack.c.l.b16 %v555
        %v1228 = vunpack.c.l.b16 %v556
        %v1229 = vunpack.c.l.b16 %v557
        %v1230 = vunpack.c.l.b16 %v558
        %v1231 = vunpack.c.l.b16 %v559
        %v1232 = vunpack.c.l.b16 %v560
        %v1233 = vunpack.c.l.b16 %v561
        %v1234 = vunpack.c.l.b16 %v562
        %v1235 = vunpack.c.l.b16 %v563
        %v1236 = vunpack.c.l.b16 %v564
        %v1237 = vunpack.c.l.b16 %v565
        %v1238 = vunpack.c.l.b16 %v566
        %v1239 = vunpack.c.l.b16 %v567
        %v1240 = vunpack.c.l.b16 %v568
        %v1241 = vunpack.c.l.b16 %v569
        %v1242 = vunpack.c.l.b16 %v570
        %v1243 = vunpack.c.l.b16 %v571
        %v1244 = vunpack.c.l.b16 %v572
        %v1245 = vunpack.c.l.b16 %v573
        %v1246 = vunpack.c.l.b16 %v574
        %v1247 = vunpack.c.l.b16 %v575
        %v1248 = vunpack.c.l.b16 %v576
        %v1249 = vunpack.c.l.b16 %v577
        %v1250 = vunpack.c.l.b16 %v578
        %v1251 = vunpack.c.l.b16 %v579
        %v1252 = vunpack.c.l.b16 %v580
        %v1253 = vunpack.c.l.b16 %v581
        %v1254 = vunpack.c.l.b16 %v582
        %v1255 = vunpack.c.l.b16 %v583
        %v1256 = vpack.c.b16 %v1001, %v1000
        %v1257 = vpack.c.b16 %v1003, %v1002
        %v1258 = vpack.c.b16 %v1005, %v1004
        %v1259 = vpack.c.b16 %v1007, %v1006
        %v1260 = vpack.c.b16 %v1009, %v1008
        %v1261 = vpack.c.b16 %v1011, %v1010
        %v1262 = vpack.c.b16 %v1013, %v1012
        %v1263 = vpack.c.b16 %v1015, %v1014
        %v1264 = vpack.c.b16 %v1017, %v1016
        %v1265 = vpack.c.b16 %v1019, %v1018
        %v1266 = vpack.c.b16 %v1021, %v1020
        %v1267 = vpack.c.b16 %v1023, %v1022
        %v1268 = vpack.c.b16 %v1025, %v1024
        %v1269 = vpack.c.b16 %v1027, %v1026
        %v1270 = vpack.c.b16 %v1029, %v1028
        %v1271 = vpack.c.b16 %v1031, %v1030
        %v1272 = vpack.c.b16 %v1033, %v1032
        %v1273 = vpack.c.b16 %v1035, %v1034
        %v1274 = vpack.c.b16 %v1037, %v1036
        %v1275 = vpack.c.b16 %v1039, %v1038
        %v1276 = vpack.c.b16 %v1041, %v1040
        %v1277 = vpack.c.b16 %v1043, %v1042
        %v1278 = vpack.c.b16 %v1045, %v1044
        %v1279 = vpack.c.b16 %v1047, %v1046
        %v1280 = vpack.c.b16 %v1049, %v1048
        %v1281 = vpack.c.b16 %v1051, %v1050
        %v1282 = vpack.c.b16 %v1053, %v1052
        %v1283 = vpack.c.b16 %v1055, %v1054
        %v1284 = vpack.c.b16 %v1057, %v1056
        %v1285 = vpack.c.b16 %v1059, %v1058
        %v1286 = vpack.c.b16 %v1061, %v1060
        %v1287 = vpack.c.b16 %v1063, %v1062
        %v1288 = vpack.c.b16 %v1065, %v1064
        %v1289 = vpack.c.b16 %v1067, %v1066
        %v1290 = vpack.c.b16 %v1069, %v1068
        %v1291 = vpack.c.b16 %v1071, %v1070
        %v1292 = vpack.c.b16 %v1073, %v1072
        %v1293 = vpack.c.b16 %v1075, %v1074
        %v1294 = vpack.c.b16 %v1077, %v1076
        %v1295 = vpack.c.b16 %v1079, %v1078
        %v1296 = vpack.c.b16 %v1081, %v1080
        %v1297 = vpack.c.b16 %v1083, %v1082
        %v1298 = vpack.c.b16 %v1085, %v1084
        %v1299 = vpack.c.b16 %v1087, %v1086
        %v1300 = vpack.c.b16 %v1089, %v1088
        %v1301 = vpack.c.b16 %v1091, %v1090
        %v1302 = vpack.c.b16 %v1093, %v1092
        %v1303 = vpack.c.b16 %v1095, %v1094
        %v1304 = vpack.c.b16 %v1097, %v1096
        %v1305 = vpack.c.b16 %v1099, %v1098
        %v1306 = vpack.c.b16 %v1101, %v1100
        %v1307 = vpack.c.b16 %v1103, %v1102
        %v1308 = vpack.c.b16 %v1105, %v1104
        %v1309 = vpack.c.b16 %v1107, %v1106
        %v1310 = vpack.c.b16 %v1109, %v1108
        %v1311 = vpack.c.b16 %v1111, %v1110
        %v1312 = vpack.c.b16 %v1113, %v1112
        %v1313 = vpack.c.b16 %v1115, %v1114
        %v1314 = vpack.c.b16 %v1117, %v1116
        %v1315 = vpack.c.b16 %v1119, %v1118
        %v1316 = vpack.c.b16 %v1121, %v1120
        %v1317 = vpack.c.b16 %v1123, %v1122
        %v1318 = vpack.c.b16 %v1125, %v1124
        %v1319 = vpack.c.b16 %v1127, %v1126
        %v1320 = vpack.c.b16 %v1129, %v1128
        %v1321 = vpack.c.b16 %v1131, %v1130
        %v1322 = vpack.c.b16 %v1133, %v1132
        %v1323 = vpack.c.b16 %v1135, %v1134
        %v1324 = vpack.c.b16 %v1137, %v1136
        %v1325 = vpack.c.b16 %v1139, %v1138
        %v1326 = vpack.c.b16 %v1141, %v1140
        %v1327 = vpack.c.b16 %v1143, %v1142
        %v1328 = vpack.c.b16 %v1145, %v1144
        %v1329 = vpack.c.b16 %v1147, %v1146
        %v1330 = vpack.c.b16 %v1149, %v1148
        %v1331 = vpack.c.b16 %v1151, %v1150
        %v1332 = vpack.c.b16 %v1153, %v1152
        %v1333 = vpack.c.b16 %v1155, %v1154
        %v1334 = vpack.c.b16 %v1157, %v1156
        %v1335 = vpack.c.b16 %v1159, %v1158
        %v1336 = vpack.c.b16 %v1161, %v1160
        %v1337 = vpack.c.b16 %v1163, %v1162
        %v1338 = vpack.c.b16 %v1165, %v1164
        %v1339 = vpack.c.b16 %v1167, %v1166
        %v1340 = vpack.c.b16 %v1169, %v1168
        %v1341 = vpack.c.b16 %v1171, %v1170
        %v1342 = vpack.c.b16 %v1173, %v1172
        %v1343 = vpack.c.b16 %v1175, %v1174
        %v1344 = vpack.c.b16 %v1177, %v1176
        %v1345 = vpack.c.b16 %v1179, %v1178
        %v1346 = vpack.c.b16 %v1181, %v1180
        %v1347 = vpack.c.b16 %v1183, %v1182
        %v1348 = vpack.c.b16 %v1185, %v1184
        %v1349 = vpack.c.b16 %v1187, %v1186
        %v1350 = vpack.c.b16 %v1189, %v1188
        %v1351 = vpack.c.b16 %v1191, %v1190
        %v1352 = vpack.c.b16 %v1193, %v1192
        %v1353 = vpack.c.b16 %v1195, %v1194
        %v1354 = vpack.c.b16 %v1197, %v1196
        %v1355 = vpack.c.b16 %v1199, %v1198
        %v1356 = vpack.c.b16 %v1201, %v1200
        %v1357 = vpack.c.b16 %v1203, %v1202
        %v1358 = vpack.c.b16 %v1205, %v1204
        %v1359 = vpack.c.b16 %v1207, %v1206
        %v1360 = vpack.c.b16 %v1209, %v1208
        %v1361 = vpack.c.b16 %v1211, %v1210
        %v1362 = vpack.c.b16 %v1213, %v1212
        %v1363 = vpack.c.b16 %v1215, %v1214
        %v1364 = vpack.c.b16 %v1217, %v1216
        %v1365 = vpack.c.b16 %v1219, %v1218
        %v1366 = vpack.c.b16 %v1221, %v1220
        %v1367 = vpack.c.b16 %v1223, %v1222
        %v1368 = vpack.c.b16 %v1225, %v1224
        %v1369 = vpack.c.b16 %v1227, %v1226
        %v1370 = vpack.c.b16 %v1229, %v1228
        %v1371 = vpack.c.b16 %v1231, %v1230
        %v1372 = vpack.c.b16 %v1233, %v1232
        %v1373 = vpack.c.b16 %v1235, %v1234
        %v1374 = vpack.c.b16 %v1237, %v1236
        %v1375 = vpack.c.b16 %v1239, %v1238
        %v1376 = vpack.c.b16 %v1241, %v1240
        %v1377 = vpack.c.b16 %v1243, %v1242
        %v1378 = vpack.c.b16 %v1245, %v1244
        %v1379 = vpack.c.b16 %v1247, %v1246
        %v1380 = vpack.c.b16 %v1249, %v1248
        %v1381 = vpack.c.b16 %v1251, %v1250
        %v1382 = vpack.c.b16 %v1253, %v1252
        %v1383 = vpack.c.b16 %v1255, %v1254
        %1512 = vmatprep.subr.bf16.mxu0 0
        %1513 = vmatpush1.bf16.msra.mxu0 %v1256
        %1514 = vmatprep.subr.bf16.mxu0 0
        %1515 = vmatpush1.bf16.msra.mxu0 %v1257
        %1516 = vmatprep.subr.bf16.mxu0 0
        %1517 = vmatpush1.bf16.msra.mxu0 %v1258
        %1518 = vmatprep.subr.bf16.mxu0 0
        %1519 = vmatpush1.bf16.msra.mxu0 %v1259
        %1520 = vmatprep.subr.bf16.mxu0 0
        %1521 = vmatpush1.bf16.msra.mxu0 %v1260
        %1522 = vmatprep.subr.bf16.mxu0 0
        %1523 = vmatpush1.bf16.msra.mxu0 %v1261
        %1524 = vmatprep.subr.bf16.mxu0 0
        %1525 = vmatpush1.bf16.msra.mxu0 %v1262
        %1526 = vmatprep.subr.bf16.mxu0 0
        %1527 = vmatpush1.bf16.msra.mxu0 %v1263
        %1528 = vmatprep.subr.bf16.mxu0 0
        %1529 = vmatpush1.bf16.msra.mxu0 %v1264
        %1530 = vmatprep.subr.bf16.mxu0 0
        %1531 = vmatpush1.bf16.msra.mxu0 %v1265
        %1532 = vmatprep.subr.bf16.mxu0 0
        %1533 = vmatpush1.bf16.msra.mxu0 %v1266
        %1534 = vmatprep.subr.bf16.mxu0 0
        %1535 = vmatpush1.bf16.msra.mxu0 %v1267
        %1536 = vmatprep.subr.bf16.mxu0 0
        %1537 = vmatpush1.bf16.msra.mxu0 %v1268
        %1538 = vmatprep.subr.bf16.mxu0 0
        %1539 = vmatpush1.bf16.msra.mxu0 %v1269
        %1540 = vmatprep.subr.bf16.mxu0 0
        %1541 = vmatpush1.bf16.msra.mxu0 %v1270
        %1542 = vmatprep.subr.bf16.mxu0 0
        %1543 = vmatpush1.bf16.msra.mxu0 %v1271
        %1544 = vmatprep.mubr.bf16.mxu0 %v681
        %1545 = vmatmul.mubr.bf16.gmra.mrb[0].mxu0 %v680
        %v1546 = vpop.f32.mrb[0].mxu0
        %v1547 = vadd.f32 0.0, %v1546
        %v1548 = vpop.f32.mrb[0].mxu0
        %v1549 = vpop.f32.mrb[0].mxu0
        %v1550 = vadd.f32 0.0, %v1549
        %v1551 = vpop.f32.mrb[0].mxu0
        %1552 = vmatprep.mubr.bf16.mxu0 %v697
        %1553 = vmatmul.mubr.bf16.gmra.mrb[0].mxu0 %v696
        %v1554 = vpop.f32.mrb[0].mxu0
        %v1555 = vadd.f32 0.0, %v1554
        %v1556 = vpop.f32.mrb[0].mxu0
        %v1557 = vpop.f32.mrb[0].mxu0
        %v1558 = vadd.f32 0.0, %v1557
        %v1559 = vpop.f32.mrb[0].mxu0
        %1560 = vdwg.mxu0
        %1561 = vmatprep.subr.bf16.mxu0 0
        %1562 = vmatpush1.bf16.msra.mxu0 %v1272
        %1563 = vmatprep.subr.bf16.mxu0 0
        %1564 = vmatpush1.bf16.msra.mxu0 %v1273
        %1565 = vmatprep.subr.bf16.mxu0 0
        %1566 = vmatpush1.bf16.msra.mxu0 %v1274
        %1567 = vmatprep.subr.bf16.mxu0 0
        %1568 = vmatpush1.bf16.msra.mxu0 %v1275
        %1569 = vmatprep.subr.bf16.mxu0 0
        %1570 = vmatpush1.bf16.msra.mxu0 %v1276
        %1571 = vmatprep.subr.bf16.mxu0 0
        %1572 = vmatpush1.bf16.msra.mxu0 %v1277
        %1573 = vmatprep.subr.bf16.mxu0 0
        %1574 = vmatpush1.bf16.msra.mxu0 %v1278
        %1575 = vmatprep.subr.bf16.mxu0 0
        %1576 = vmatpush1.bf16.msra.mxu0 %v1279
        %1577 = vmatprep.subr.bf16.mxu0 0
        %1578 = vmatpush1.bf16.msra.mxu0 %v1280
        %1579 = vmatprep.subr.bf16.mxu0 0
        %1580 = vmatpush1.bf16.msra.mxu0 %v1281
        %1581 = vmatprep.subr.bf16.mxu0 0
        %1582 = vmatpush1.bf16.msra.mxu0 %v1282
        %1583 = vmatprep.subr.bf16.mxu0 0
        %1584 = vmatpush1.bf16.msra.mxu0 %v1283
        %1585 = vmatprep.subr.bf16.mxu0 0
        %1586 = vmatpush1.bf16.msra.mxu0 %v1284
        %1587 = vmatprep.subr.bf16.mxu0 0
        %1588 = vmatpush1.bf16.msra.mxu0 %v1285
        %1589 = vmatprep.subr.bf16.mxu0 0
        %1590 = vmatpush1.bf16.msra.mxu0 %v1286
        %1591 = vmatprep.subr.bf16.mxu0 0
        %1592 = vmatpush1.bf16.msra.mxu0 %v1287
        %1593 = vmatprep.mubr.bf16.mxu0 %v683
        %1594 = vmatmul.mubr.bf16.gmra.mrb[0].mxu0 %v682
        %v1595 = vpop.f32.mrb[0].mxu0
        %v1596 = vadd.f32 %v1547, %v1595
        %v1597 = vpop.f32.mrb[0].mxu0
        %v1598 = vpop.f32.mrb[0].mxu0
        %v1599 = vadd.f32 %v1550, %v1598
        %v1600 = vpop.f32.mrb[0].mxu0
        %1601 = vmatprep.mubr.bf16.mxu0 %v699
        %1602 = vmatmul.mubr.bf16.gmra.mrb[0].mxu0 %v698
        %v1603 = vpop.f32.mrb[0].mxu0
        %v1604 = vadd.f32 %v1555, %v1603
        %v1605 = vpop.f32.mrb[0].mxu0
        %v1606 = vpop.f32.mrb[0].mxu0
        %v1607 = vadd.f32 %v1558, %v1606
        %v1608 = vpop.f32.mrb[0].mxu0
        %1609 = vdwg.mxu0
        %1610 = vmatprep.subr.bf16.mxu0 0
        %1611 = vmatpush1.bf16.msra.mxu0 %v1288
        %1612 = vmatprep.subr.bf16.mxu0 0
        %1613 = vmatpush1.bf16.msra.mxu0 %v1289
        %1614 = vmatprep.subr.bf16.mxu0 0
        %1615 = vmatpush1.bf16.msra.mxu0 %v1290
        %1616 = vmatprep.subr.bf16.mxu0 0
        %1617 = vmatpush1.bf16.msra.mxu0 %v1291
        %1618 = vmatprep.subr.bf16.mxu0 0
        %1619 = vmatpush1.bf16.msra.mxu0 %v1292
        %1620 = vmatprep.subr.bf16.mxu0 0
        %1621 = vmatpush1.bf16.msra.mxu0 %v1293
        %1622 = vmatprep.subr.bf16.mxu0 0
        %1623 = vmatpush1.bf16.msra.mxu0 %v1294
        %1624 = vmatprep.subr.bf16.mxu0 0
        %1625 = vmatpush1.bf16.msra.mxu0 %v1295
        %1626 = vmatprep.subr.bf16.mxu0 0
        %1627 = vmatpush1.bf16.msra.mxu0 %v1296
        %1628 = vmatprep.subr.bf16.mxu0 0
        %1629 = vmatpush1.bf16.msra.mxu0 %v1297
        %1630 = vmatprep.subr.bf16.mxu0 0
        %1631 = vmatpush1.bf16.msra.mxu0 %v1298
        %1632 = vmatprep.subr.bf16.mxu0 0
        %1633 = vmatpush1.bf16.msra.mxu0 %v1299
        %1634 = vmatprep.subr.bf16.mxu0 0
        %1635 = vmatpush1.bf16.msra.mxu0 %v1300
        %1636 = vmatprep.subr.bf16.mxu0 0
        %1637 = vmatpush1.bf16.msra.mxu0 %v1301
        %1638 = vmatprep.subr.bf16.mxu0 0
        %1639 = vmatpush1.bf16.msra.mxu0 %v1302
        %1640 = vmatprep.subr.bf16.mxu0 0
        %1641 = vmatpush1.bf16.msra.mxu0 %v1303
        %1642 = vmatprep.mubr.bf16.mxu0 %v685
        %1643 = vmatmul.mubr.bf16.gmra.mrb[0].mxu0 %v684
        %v1644 = vpop.f32.mrb[0].mxu0
        %v1645 = vadd.f32 %v1596, %v1644
        %v1646 = vpop.f32.mrb[0].mxu0
        %v1647 = vpop.f32.mrb[0].mxu0
        %v1648 = vadd.f32 %v1599, %v1647
        %v1649 = vpop.f32.mrb[0].mxu0
        %1650 = vmatprep.mubr.bf16.mxu0 %v701
        %1651 = vmatmul.mubr.bf16.gmra.mrb[0].mxu0 %v700
        %v1652 = vpop.f32.mrb[0].mxu0
        %v1653 = vadd.f32 %v1604, %v1652
        %v1654 = vpop.f32.mrb[0].mxu0
        %v1655 = vpop.f32.mrb[0].mxu0
        %v1656 = vadd.f32 %v1607, %v1655
        %v1657 = vpop.f32.mrb[0].mxu0
        %1658 = vdwg.mxu0
        %1659 = vmatprep.subr.bf16.mxu0 0
        %1660 = vmatpush1.bf16.msra.mxu0 %v1304
        %1661 = vmatprep.subr.bf16.mxu0 0
        %1662 = vmatpush1.bf16.msra.mxu0 %v1305
        %1663 = vmatprep.subr.bf16.mxu0 0
        %1664 = vmatpush1.bf16.msra.mxu0 %v1306
        %1665 = vmatprep.subr.bf16.mxu0 0
        %1666 = vmatpush1.bf16.msra.mxu0 %v1307
        %1667 = vmatprep.subr.bf16.mxu0 0
        %1668 = vmatpush1.bf16.msra.mxu0 %v1308
        %1669 = vmatprep.subr.bf16.mxu0 0
        %1670 = vmatpush1.bf16.msra.mxu0 %v1309
        %1671 = vmatprep.subr.bf16.mxu0 0
        %1672 = vmatpush1.bf16.msra.mxu0 %v1310
        %1673 = vmatprep.subr.bf16.mxu0 0
        %1674 = vmatpush1.bf16.msra.mxu0 %v1311
        %1675 = vmatprep.subr.bf16.mxu0 0
        %1676 = vmatpush1.bf16.msra.mxu0 %v1312
        %1677 = vmatprep.subr.bf16.mxu0 0
        %1678 = vmatpush1.bf16.msra.mxu0 %v1313
        %1679 = vmatprep.subr.bf16.mxu0 0
        %1680 = vmatpush1.bf16.msra.mxu0 %v1314
        %1681 = vmatprep.subr.bf16.mxu0 0
        %1682 = vmatpush1.bf16.msra.mxu0 %v1315
        %1683 = vmatprep.subr.bf16.mxu0 0
        %1684 = vmatpush1.bf16.msra.mxu0 %v1316
        %1685 = vmatprep.subr.bf16.mxu0 0
        %1686 = vmatpush1.bf16.msra.mxu0 %v1317
        %1687 = vmatprep.subr.bf16.mxu0 0
        %1688 = vmatpush1.bf16.msra.mxu0 %v1318
        %1689 = vmatprep.subr.bf16.mxu0 0
        %1690 = vmatpush1.bf16.msra.mxu0 %v1319
        %1691 = vmatprep.mubr.bf16.mxu0 %v687
        %1692 = vmatmul.mubr.bf16.gmra.mrb[0].mxu0 %v686
        %v1693 = vpop.f32.mrb[0].mxu0
        %v1694 = vadd.f32 %v1645, %v1693
        %v1695 = vpop.f32.mrb[0].mxu0
        %v1696 = vpop.f32.mrb[0].mxu0
        %v1697 = vadd.f32 %v1648, %v1696
        %v1698 = vpop.f32.mrb[0].mxu0
        %1699 = vmatprep.mubr.bf16.mxu0 %v703
        %1700 = vmatmul.mubr.bf16.gmra.mrb[0].mxu0 %v702
        %v1701 = vpop.f32.mrb[0].mxu0
        %v1702 = vadd.f32 %v1653, %v1701
        %v1703 = vpop.f32.mrb[0].mxu0
        %v1704 = vpop.f32.mrb[0].mxu0
        %v1705 = vadd.f32 %v1656, %v1704
        %v1706 = vpop.f32.mrb[0].mxu0
        %1707 = vdwg.mxu0
        %1708 = vmatprep.subr.bf16.mxu0 0
        %1709 = vmatpush1.bf16.msra.mxu0 %v1320
        %1710 = vmatprep.subr.bf16.mxu0 0
        %1711 = vmatpush1.bf16.msra.mxu0 %v1321
        %1712 = vmatprep.subr.bf16.mxu0 0
        %1713 = vmatpush1.bf16.msra.mxu0 %v1322
        %1714 = vmatprep.subr.bf16.mxu0 0
        %1715 = vmatpush1.bf16.msra.mxu0 %v1323
        %1716 = vmatprep.subr.bf16.mxu0 0
        %1717 = vmatpush1.bf16.msra.mxu0 %v1324
        %1718 = vmatprep.subr.bf16.mxu0 0
        %1719 = vmatpush1.bf16.msra.mxu0 %v1325
        %1720 = vmatprep.subr.bf16.mxu0 0
        %1721 = vmatpush1.bf16.msra.mxu0 %v1326
        %1722 = vmatprep.subr.bf16.mxu0 0
        %1723 = vmatpush1.bf16.msra.mxu0 %v1327
        %1724 = vmatprep.subr.bf16.mxu0 0
        %1725 = vmatpush1.bf16.msra.mxu0 %v1328
        %1726 = vmatprep.subr.bf16.mxu0 0
        %1727 = vmatpush1.bf16.msra.mxu0 %v1329
        %1728 = vmatprep.subr.bf16.mxu0 0
        %1729 = vmatpush1.bf16.msra.mxu0 %v1330
        %1730 = vmatprep.subr.bf16.mxu0 0
        %1731 = vmatpush1.bf16.msra.mxu0 %v1331
        %1732 = vmatprep.subr.bf16.mxu0 0
        %1733 = vmatpush1.bf16.msra.mxu0 %v1332
        %1734 = vmatprep.subr.bf16.mxu0 0
        %1735 = vmatpush1.bf16.msra.mxu0 %v1333
        %1736 = vmatprep.subr.bf16.mxu0 0
        %1737 = vmatpush1.bf16.msra.mxu0 %v1334
        %1738 = vmatprep.subr.bf16.mxu0 0
        %1739 = vmatpush1.bf16.msra.mxu0 %v1335
        %1740 = vmatprep.mubr.bf16.mxu0 %v689
        %1741 = vmatmul.mubr.bf16.gmra.mrb[0].mxu0 %v688
        %v1742 = vpop.f32.mrb[0].mxu0
        %v1743 = vadd.f32 %v1694, %v1742
        %v1744 = vpop.f32.mrb[0].mxu0
        %v1745 = vpop.f32.mrb[0].mxu0
        %v1746 = vadd.f32 %v1697, %v1745
        %v1747 = vpop.f32.mrb[0].mxu0
        %1748 = vmatprep.mubr.bf16.mxu0 %v705
        %1749 = vmatmul.mubr.bf16.gmra.mrb[0].mxu0 %v704
        %v1750 = vpop.f32.mrb[0].mxu0
        %v1751 = vadd.f32 %v1702, %v1750
        %v1752 = vpop.f32.mrb[0].mxu0
        %v1753 = vpop.f32.mrb[0].mxu0
        %v1754 = vadd.f32 %v1705, %v1753
        %v1755 = vpop.f32.mrb[0].mxu0
        %1756 = vdwg.mxu0
        %1757 = vmatprep.subr.bf16.mxu0 0
        %1758 = vmatpush1.bf16.msra.mxu0 %v1336
        %1759 = vmatprep.subr.bf16.mxu0 0
        %1760 = vmatpush1.bf16.msra.mxu0 %v1337
        %1761 = vmatprep.subr.bf16.mxu0 0
        %1762 = vmatpush1.bf16.msra.mxu0 %v1338
        %1763 = vmatprep.subr.bf16.mxu0 0
        %1764 = vmatpush1.bf16.msra.mxu0 %v1339
        %1765 = vmatprep.subr.bf16.mxu0 0
        %1766 = vmatpush1.bf16.msra.mxu0 %v1340
        %1767 = vmatprep.subr.bf16.mxu0 0
        %1768 = vmatpush1.bf16.msra.mxu0 %v1341
        %1769 = vmatprep.subr.bf16.mxu0 0
        %1770 = vmatpush1.bf16.msra.mxu0 %v1342
        %1771 = vmatprep.subr.bf16.mxu0 0
        %1772 = vmatpush1.bf16.msra.mxu0 %v1343
        %1773 = vmatprep.subr.bf16.mxu0 0
        %1774 = vmatpush1.bf16.msra.mxu0 %v1344
        %1775 = vmatprep.subr.bf16.mxu0 0
        %1776 = vmatpush1.bf16.msra.mxu0 %v1345
        %1777 = vmatprep.subr.bf16.mxu0 0
        %1778 = vmatpush1.bf16.msra.mxu0 %v1346
        %1779 = vmatprep.subr.bf16.mxu0 0
        %1780 = vmatpush1.bf16.msra.mxu0 %v1347
        %1781 = vmatprep.subr.bf16.mxu0 0
        %1782 = vmatpush1.bf16.msra.mxu0 %v1348
        %1783 = vmatprep.subr.bf16.mxu0 0
        %1784 = vmatpush1.bf16.msra.mxu0 %v1349
        %1785 = vmatprep.subr.bf16.mxu0 0
        %1786 = vmatpush1.bf16.msra.mxu0 %v1350
        %1787 = vmatprep.subr.bf16.mxu0 0
        %1788 = vmatpush1.bf16.msra.mxu0 %v1351
        %1789 = vmatprep.mubr.bf16.mxu0 %v691
        %1790 = vmatmul.mubr.bf16.gmra.mrb[0].mxu0 %v690
        %v1791 = vpop.f32.mrb[0].mxu0
        %v1792 = vadd.f32 %v1743, %v1791
        %v1793 = vpop.f32.mrb[0].mxu0
        %v1794 = vpop.f32.mrb[0].mxu0
        %v1795 = vadd.f32 %v1746, %v1794
        %v1796 = vpop.f32.mrb[0].mxu0
        %1797 = vmatprep.mubr.bf16.mxu0 %v707
        %1798 = vmatmul.mubr.bf16.gmra.mrb[0].mxu0 %v706
        %v1799 = vpop.f32.mrb[0].mxu0
        %v1800 = vadd.f32 %v1751, %v1799
        %v1801 = vpop.f32.mrb[0].mxu0
        %v1802 = vpop.f32.mrb[0].mxu0
        %v1803 = vadd.f32 %v1754, %v1802
        %v1804 = vpop.f32.mrb[0].mxu0
        %1805 = vdwg.mxu0
        %1806 = vmatprep.subr.bf16.mxu0 0
        %1807 = vmatpush1.bf16.msra.mxu0 %v1352
        %1808 = vmatprep.subr.bf16.mxu0 0
        %1809 = vmatpush1.bf16.msra.mxu0 %v1353
        %1810 = vmatprep.subr.bf16.mxu0 0
        %1811 = vmatpush1.bf16.msra.mxu0 %v1354
        %1812 = vmatprep.subr.bf16.mxu0 0
        %1813 = vmatpush1.bf16.msra.mxu0 %v1355
        %1814 = vmatprep.subr.bf16.mxu0 0
        %1815 = vmatpush1.bf16.msra.mxu0 %v1356
        %1816 = vmatprep.subr.bf16.mxu0 0
        %1817 = vmatpush1.bf16.msra.mxu0 %v1357
        %1818 = vmatprep.subr.bf16.mxu0 0
        %1819 = vmatpush1.bf16.msra.mxu0 %v1358
        %1820 = vmatprep.subr.bf16.mxu0 0
        %1821 = vmatpush1.bf16.msra.mxu0 %v1359
        %1822 = vmatprep.subr.bf16.mxu0 0
        %1823 = vmatpush1.bf16.msra.mxu0 %v1360
        %1824 = vmatprep.subr.bf16.mxu0 0
        %1825 = vmatpush1.bf16.msra.mxu0 %v1361
        %1826 = vmatprep.subr.bf16.mxu0 0
        %1827 = vmatpush1.bf16.msra.mxu0 %v1362
        %1828 = vmatprep.subr.bf16.mxu0 0
        %1829 = vmatpush1.bf16.msra.mxu0 %v1363
        %1830 = vmatprep.subr.bf16.mxu0 0
        %1831 = vmatpush1.bf16.msra.mxu0 %v1364
        %1832 = vmatprep.subr.bf16.mxu0 0
        %1833 = vmatpush1.bf16.msra.mxu0 %v1365
        %1834 = vmatprep.subr.bf16.mxu0 0
        %1835 = vmatpush1.bf16.msra.mxu0 %v1366
        %1836 = vmatprep.subr.bf16.mxu0 0
        %1837 = vmatpush1.bf16.msra.mxu0 %v1367
        %1838 = vmatprep.mubr.bf16.mxu0 %v693
        %1839 = vmatmul.mubr.bf16.gmra.mrb[0].mxu0 %v692
        %v1840 = vpop.f32.mrb[0].mxu0
        %v1841 = vadd.f32 %v1792, %v1840
        %v1842 = vpop.f32.mrb[0].mxu0
        %v1843 = vpop.f32.mrb[0].mxu0
        %v1844 = vadd.f32 %v1795, %v1843
        %v1845 = vpop.f32.mrb[0].mxu0
        %1846 = vmatprep.mubr.bf16.mxu0 %v709
        %1847 = vmatmul.mubr.bf16.gmra.mrb[0].mxu0 %v708
        %v1848 = vpop.f32.mrb[0].mxu0
        %v1849 = vadd.f32 %v1800, %v1848
        %v1850 = vpop.f32.mrb[0].mxu0
        %v1851 = vpop.f32.mrb[0].mxu0
        %v1852 = vadd.f32 %v1803, %v1851
        %v1853 = vpop.f32.mrb[0].mxu0
        %1854 = vdwg.mxu0
        %1855 = vmatprep.subr.bf16.mxu0 0
        %1856 = vmatpush1.bf16.msra.mxu0 %v1368
        %1857 = vmatprep.subr.bf16.mxu0 0
        %1858 = vmatpush1.bf16.msra.mxu0 %v1369
        %1859 = vmatprep.subr.bf16.mxu0 0
        %1860 = vmatpush1.bf16.msra.mxu0 %v1370
        %1861 = vmatprep.subr.bf16.mxu0 0
        %1862 = vmatpush1.bf16.msra.mxu0 %v1371
        %1863 = vmatprep.subr.bf16.mxu0 0
        %1864 = vmatpush1.bf16.msra.mxu0 %v1372
        %1865 = vmatprep.subr.bf16.mxu0 0
        %1866 = vmatpush1.bf16.msra.mxu0 %v1373
        %1867 = vmatprep.subr.bf16.mxu0 0
        %1868 = vmatpush1.bf16.msra.mxu0 %v1374
        %1869 = vmatprep.subr.bf16.mxu0 0
        %1870 = vmatpush1.bf16.msra.mxu0 %v1375
        %1871 = vmatprep.subr.bf16.mxu0 0
        %1872 = vmatpush1.bf16.msra.mxu0 %v1376
        %1873 = vmatprep.subr.bf16.mxu0 0
        %1874 = vmatpush1.bf16.msra.mxu0 %v1377
        %1875 = vmatprep.subr.bf16.mxu0 0
        %1876 = vmatpush1.bf16.msra.mxu0 %v1378
        %1877 = vmatprep.subr.bf16.mxu0 0
        %1878 = vmatpush1.bf16.msra.mxu0 %v1379
        %1879 = vmatprep.subr.bf16.mxu0 0
        %1880 = vmatpush1.bf16.msra.mxu0 %v1380
        %1881 = vmatprep.subr.bf16.mxu0 0
        %1882 = vmatpush1.bf16.msra.mxu0 %v1381
        %1883 = vmatprep.subr.bf16.mxu0 0
        %1884 = vmatpush1.bf16.msra.mxu0 %v1382
        %1885 = vmatprep.subr.bf16.mxu0 0
        %1886 = vmatpush1.bf16.msra.mxu0 %v1383
        %1887 = vmatprep.mubr.bf16.mxu0 %v695
        %1888 = vmatmul.mubr.bf16.gmra.mrb[0].mxu0 %v694
        %v1889 = vpop.f32.mrb[0].mxu0
        %v1890 = vadd.f32 %v1841, %v1889
        %v1891 = vpop.f32.mrb[0].mxu0
        %v1892 = vpop.f32.mrb[0].mxu0
        %v1893 = vadd.f32 %v1844, %v1892
        %v1894 = vpop.f32.mrb[0].mxu0
        %1895 = vmatprep.mubr.bf16.mxu0 %v711
        %1896 = vmatmul.mubr.bf16.gmra.mrb[0].mxu0 %v710
        %v1897 = vpop.f32.mrb[0].mxu0
        %v1898 = vadd.f32 %v1849, %v1897
        %v1899 = vpop.f32.mrb[0].mxu0
        %v1900 = vpop.f32.mrb[0].mxu0
        %v1901 = vadd.f32 %v1852, %v1900
        %v1902 = vpop.f32.mrb[0].mxu0
        %1903 = vdwg.mxu0
        %v1904 = vadd.f32 %v1890, %v1893
        %v1905 = vadd.f32 %v1904, %v1898
        %vm1906 = vcmask 1040384
        %v1907 = vsel %vm1906, %v1901, 0.0
        %v1908 = vadd.f32 %v1905, %v1907
        %v1909 = vrot.slane %v1908, 4
        %v1910 = vadd.f32 %v1908, %v1909
        %v1911 = vrot.slane %v1910, 2
        %v1912 = vadd.f32 %v1910, %v1911
        %v1913 = vrot.slane %v1912, 1
        %v1914 = vadd.f32 %v1912, %v1913
        %v1915 = vmul.f32 %v1914, 0.04
        %v1916 = vsub.f32 %v1890, %v1915
        %v1917 = vsub.f32 %v1893, %v1915
        %v1918 = vsub.f32 %v1898, %v1915
        %v1919 = vsub.f32 %v1901, %v1915
        %v1920 = vmul.f32 %v1916, %v1916
        %v1921 = vmul.f32 %v1917, %v1917
        %v1922 = vmul.f32 %v1918, %v1918
        %v1923 = vmul.f32 %v1919, %v1919
        %v1924 = vadd.f32 %v1920, %v1921
        %v1925 = vadd.f32 %v1924, %v1922
        %v1926 = vsel %vm1906, %v1923, 0.0
        %v1927 = vadd.f32 %v1925, %v1926
        %v1928 = vrot.slane %v1927, 4
        %v1929 = vadd.f32 %v1927, %v1928
        %v1930 = vrot.slane %v1929, 2
        %v1931 = vadd.f32 %v1929, %v1930
        %v1932 = vrot.slane %v1931, 1
        %v1933 = vadd.f32 %v1931, %v1932
        %v1934 = vmul.f32 %v1933, 0.04
        %v1935 = vadd.f32 %v1934, 0.001
        %v1936 = vrsqrt.pop %v1935
        %v1937 = vld [vmem:[%s254] sm:$0x1]
        %v1938 = vmul.f32 %v1936, %v1937
        %v1939 = vlaneseq
        %v1940 = vshrl.u32 %v1939, 7
        %v1941 = vsub.s32 0, %v1940
        %v1942 = vrot.slane %v1938, %v1941
        %v1943 = vmul.f32 %v1916, %v1942
        %v1944 = vmul.f32 %v1917, %v1942
        %v1945 = vmul.f32 %v1918, %v1942
        %v1946 = vmul.f32 %v1919, %v1942
        %v1947 = vld [vmem:[%s262] sm:$0x1]
        %v1949 = vlaneseq
        %v1950 = vshrl.u32 %v1949, 7
        %v1951 = vsub.s32 0, %v1950
        %v1952 = vrot.slane %v1947, %v1951
        %v1954 = vadd.f32 %v1943, %v1952
        %v1955 = vadd.f32 %v1944, %v1952
        %v1956 = vadd.f32 %v1945, %v1952
        %v1957 = vadd.f32 %v1946, %v1952
        %1958 = vst [vmem:[%s294] sm:$0xff] %v1954
        %1959 = vst [vmem:[%s294 + $0x8] sm:$0xff] %v1955
        %1960 = vst [vmem:[%s294 + $0x10] sm:$0xff] %v1956
        %1961 = vst [vmem:[%s294 + $0x18] sm:$0x1] %v1957
        %s1962 = sand.u32 %s132, 1
        %s1963 = scalar_lea.sflag [#allocation4], %s1962
        %s1964 = sand.u32 %s132, 1
        %s1965 = smul.addr %s1964, 32
        %s1966 = scalar_lea.vmem [#allocation10], %s1965
        // Predicated region
        $region53: #{tpu_custom_call.1} parent=35 // pred_check
          %p1967 = pneg %p142
        $region54: #{tpu_custom_call.1} parent=35 // pred_check_branch
          %1969 = sbr.rel (%p1967) target = $region56
        $region55: #{tpu_custom_call.1} parent=35 // pred_region
          %s1971 = ssub.s32 512, 512
          %1972 = vsyncadd %s1963, %s1971
          %s1973 = smul.addr %s25, 128
          %s1974 = scalar_lea.hbm %s4, %s1973
          %s1975 = sshll.u32 %s1966, 4
          %s1976 = int_to_ptr.vmem [resolvable:$true] %s1975
          %1981 = dma.vmem_to_hbm [thread:$0]  %s1976, 512, %s1974, %s1963, 128, 384, 8
        $region56: #{tpu_custom_call.1} parent=35 // pred_fallthru
          _
      $region36: #{tpu_custom_call.1} parent=5 // pred_fallthru
        _
      %p1982 = scmp.le.s32.totalorder 2, %s20
      // Predicated region
      $region57: #{tpu_custom_call.1} parent=5 // pred_check
        %p1983 = pneg %p1982
      $region58: #{tpu_custom_call.1} parent=5 // pred_check_branch
        %1985 = sbr.rel (%p1983) target = $region60
      $region59: #{tpu_custom_call.1} parent=5 // pred_region
        %s1986 = ssub.s32 %s20, 2
        // Predicated region
        $region61: #{tpu_custom_call.1} parent=59 // pred_check
          %p1987 = pneg %p148
        $region62: #{tpu_custom_call.1} parent=59 // pred_check_branch
          %1989 = sbr.rel (%p1987) target = $region64
        $region63: #{tpu_custom_call.1} parent=59 // pred_region
          %s1990 = sand.u32 %s133, 1
          %s1991 = scalar_lea.sflag [#allocation4], %s1990
          %s1992 = sand.u32 %s133, 1
          %s1993 = smul.addr %s1992, 32
          %s1994 = scalar_lea.vmem [#allocation10], %s1993
          %1995 = dma.done %s1991, 512
        $region64: #{tpu_custom_call.1} parent=59 // pred_fallthru
          _
      $region60: #{tpu_custom_call.1} parent=5 // pred_fallthru
        _
    $region6: #{tpu_custom_call.1} parent=1 // loop_footer
      %s24 = sadd.s32 1, %s20
    $region7: #{tpu_custom_call.1} parent=1 // loop_footer_branch
      %19 = sbr.rel target = $region3
    $region8: #{tpu_custom_call.1} parent=1 // loop_exit
      _
    %1996 = vsyncpa [#allocation3], 1
    %s1997 = scalar_lea.sflag [#allocation3], 1
    %1998 = vsyncpa %s1997, 1
    %1999 = vsyncpa [#allocation6], 1
    %s2000 = scalar_lea.sflag [#allocation6], 1
    %2001 = vsyncpa %s2000, 1
    %2002 = vsyncpa [#allocation9], 1
    %s2003 = scalar_lea.sflag [#allocation9], 1
    %2004 = vsyncpa %s2003, 1
    %2005 = vsyncpa [#allocation4], 1
    %s2006 = scalar_lea.sflag [#allocation4], 1
    %2007 = vsyncpa %s2006, 1

</llo_original>
